<compile_context>
chip_gen: v7x
topology: tpu7x:2x2x1
jax: 0.10.0
libtpu: 0.0.40
codegen_flags: <defaults>
</compile_context>

<pallas_src>
import functools

import jax
import jax.numpy as jnp
from jax import lax
from jax.experimental import pallas as pl
from jax.experimental.pallas import tpu as pltpu

C, H, W, O, KP = 64, 28, 28, 128, 3      # channels, x dim2, x dim3 (conv axis), out-ch, taps
HP = 32                                  # H padded to a sublane multiple
M = W * HP                               # 896 flattened rows (n*HP + m)
K = KP * C                               # 192 contraction
KPAD = 256                               # contraction padded to one MXU pass


def _kernel(a_ref, w2_ref, w1_ref, o_ref, *, shift):
    # a_ref : (M, KPAD) bf16   pre-unfolded LHS, row = n*HP + m
    # w2_ref: (KPAD, O) bf16
    # w1_ref: (2, O)    f32
    # o_ref : (M, O)    f32
    t4 = jnp.dot(a_ref[...], w2_ref[...], preferred_element_type=jnp.float32)

    # Circular roll of the n axis == roll by 32*shift rows of the flat slab.
    # 32-row offsets are vreg-aligned, so this slice+concat is pure vreg copies
    # (no relayout, no masked stores).
    r = (HP * shift) % M
    rolled = jnp.concatenate([t4[M - r:, :], t4[:M - r, :]], axis=0)

    w1 = w1_ref[...]
    if shift == 1:
        out = t4 * w1[0:1, :] + rolled * w1[1:2, :]
    else:
        out = t4 * w1[1:2, :] + rolled * w1[0:1, :]
    o_ref[...] = out


@functools.partial(jax.jit, static_argnames=("shift",))
def kernel_generated_1_forward(x, w1, w2, shift=1):
    # x: (1, 64, 28, 28) ; w1: (128, 2) ; w2: (128, 3, 64) ; shift in {+1, -1}
    # Fold the final roll along output dim3 (= x dim2) into the input.
    x_r = jnp.roll(x, shift, axis=2)
    # Layout (n, m, c): n = x dim3 (conv axis), m = x dim2, c = channels.
    xt = jnp.transpose(x_r[0], (2, 1, 0))                      # (28, 28, 64)
    xp = jnp.pad(xt, ((1, 1), (0, HP - H), (0, 0)))            # (30, 32, 64)
    # Pre-unfold the 3 taps into a lane-dense LHS (M, K); pad K to 256.
    a = jnp.stack([xp[p:p + W] for p in range(KP)], axis=2)    # (28, 32, 3, 64)
    a = a.reshape(M, K)
    a = jnp.pad(a, ((0, 0), (0, KPAD - K))).astype(jnp.bfloat16)

    w2f = jnp.transpose(w2, (1, 2, 0)).reshape(K, O)           # (192, 128)
    w2f = jnp.pad(w2f, ((0, KPAD - K), (0, 0))).astype(jnp.bfloat16)
    w1t = jnp.transpose(w1, (1, 0)).astype(jnp.float32)        # (2, 128)

    out = pl.pallas_call(
        functools.partial(_kernel, shift=shift),
        out_shape=jax.ShapeDtypeStruct((M, O), jnp.float32),
        in_specs=[pl.BlockSpec(memory_space=pltpu.MemorySpace.VMEM)] * 3,
        out_specs=pl.BlockSpec(memory_space=pltpu.MemorySpace.VMEM),
        cost_estimate=pl.CostEstimate(
            flops=2 * M * KPAD * O,
            transcendentals=0,
            bytes_accessed=M * KPAD * 2 + KPAD * O * 2 + 2 * O * 4 + M * O * 4),
    )(a, w2f, w1t)

    y = out.reshape(W, HP, O)[:, :H, :]                        # (28, 28, 128)  (n, m, o)
    return jnp.transpose(y, (2, 0, 1))[None]                   # (1, 128, 28, 28)


def _reference(x, w1, w2, shift):
    # Direct jnp translation of the PyTorch forward (verification only, full f32).
    t3 = jnp.einsum('ikjl->ilkj', x)                           # (1, 28, 64, 28)
    t3 = t3.reshape(1, 1, 28, 1792)
    p = jnp.pad(t3, ((0, 0), (0, 0), (1, 1), (0, 0)))
    t3 = jnp.stack([p[:, 0, k:k + 28, :] for k in range(3)], axis=1)  # unfold (3,1), pad (1,0)
    t3 = t3.reshape(1, 3, 28, 64, 28)
    t4 = jnp.einsum('lknjm,ikj->linm', t3, w2, precision=lax.Precision.HIGHEST)
    t5 = jnp.einsum('kiml,ij->kimjl', t4, w1, precision=lax.Precision.HIGHEST)
    t6 = t5.reshape(1, 128, 56, 28)
    t6 = jnp.roll(t6, shift, axis=2)
    t6 = t6.reshape(1, 128, 28, 2, 28).sum(axis=3)
    return jnp.roll(t6, shift, axis=3)


if __name__ == "__main__":
    key = jax.random.PRNGKey(0)
    kx, k1, k2 = jax.random.split(key, 3)
    # Shapes are fixed by the module's hard-coded reshapes: x must be (1, 64, 28, 28).
    x = jax.random.normal(kx, (1, 64, 28, 28), jnp.float32)
    w1 = jax.random.normal(k1, (128, 2), jnp.float32)       # self.weights[0]
    w2 = jax.random.normal(k2, (128, 3, 64), jnp.float32)   # self.weights[1]

    # The module picks shift_direction in {+1, -1} at construction; test both.
    for shift in (1, -1):
        y = kernel_generated_1_forward(x, w1, w2, shift=shift)
        y = jax.block_until_ready(y)
        y_ref = _reference(x, w1, w2, shift)
        assert y.shape == (1, 128, 28, 28), y.shape
        rel_err = float(jnp.max(jnp.abs(y - y_ref)) / jnp.max(jnp.abs(y_ref)))
        assert rel_err < 1e-2, f"mismatch for shift={shift}, rel_err={rel_err}"
    print("KERNEL_OK")
</pallas_src>

<mosaic_0001>
module attributes {stable_mosaic.version = 11 : i64} {
  func.func @_kernel(%arg0: memref<896x256xbf16, #tpu.memory_space<vmem>>, %arg1: memref<256x128xbf16, #tpu.memory_space<vmem>>, %arg2: memref<2x128xf32, #tpu.memory_space<vmem>>, %arg3: memref<896x128xf32, #tpu.memory_space<vmem>>) attributes {dimension_semantics = [], scalar_prefetch = 0 : i64, scratch_operands = 0 : i64, tpu.core_type = #tpu.core_type<tc>} {
    %c0 = arith.constant 0 : index
    %c0_0 = arith.constant 0 : index
    %0 = vector.load %arg0[%c0, %c0_0] : memref<896x256xbf16, #tpu.memory_space<vmem>>, vector<896x256xbf16>
    %c0_1 = arith.constant 0 : index
    %c0_2 = arith.constant 0 : index
    %1 = vector.load %arg1[%c0_1, %c0_2] : memref<256x128xbf16, #tpu.memory_space<vmem>>, vector<256x128xbf16>
    %cst = arith.constant dense<0.000000e+00> : vector<896x128xf32>
    %2 = tpu.matmul %0, %1, %cst {dimension_numbers = #tpu.dot_dimension_numbers<[1], [0], [0], [1], [0, 0, 1, 1], [], []>} : vector<896x256xbf16>, vector<256x128xbf16>, vector<896x128xf32> -> vector<896x128xf32>
    %3 = vector.extract_strided_slice %2 {offsets = [864, 0], sizes = [32, 128], strides = [1, 1]} : vector<896x128xf32> to vector<32x128xf32>
    %4 = vector.extract_strided_slice %2 {offsets = [0, 0], sizes = [864, 128], strides = [1, 1]} : vector<896x128xf32> to vector<864x128xf32>
    %5 = tpu.concatenate %3, %4 in 0 : vector<32x128xf32>, vector<864x128xf32> -> vector<896x128xf32>
    %c0_3 = arith.constant 0 : index
    %c0_4 = arith.constant 0 : index
    %6 = vector.load %arg2[%c0_3, %c0_4] : memref<2x128xf32, #tpu.memory_space<vmem>>, vector<2x128xf32>
    %7 = vector.extract_strided_slice %6 {offsets = [0, 0], sizes = [1, 128], strides = [1, 1]} : vector<2x128xf32> to vector<1x128xf32>
    %8 = vector.broadcast %7 : vector<1x128xf32> to vector<896x128xf32>
    %9 = arith.mulf %2, %8 : vector<896x128xf32>
    %10 = vector.extract_strided_slice %6 {offsets = [1, 0], sizes = [1, 128], strides = [1, 1]} : vector<2x128xf32> to vector<1x128xf32>
    %11 = vector.broadcast %10 : vector<1x128xf32> to vector<896x128xf32>
    %12 = arith.mulf %5, %11 : vector<896x128xf32>
    %13 = arith.addf %9, %12 : vector<896x128xf32>
    %c0_5 = arith.constant 0 : index
    %c0_6 = arith.constant 0 : index
    %14 = vector.load %arg3[%c0_5, %c0_6] : memref<896x128xf32, #tpu.memory_space<vmem>>, vector<896x128xf32>
    tpu.vector_store %arg3[%c0_5, %c0_6], %13 {strides = array<i32>} : memref<896x128xf32, #tpu.memory_space<vmem>>, vector<896x128xf32>,
    return
  }
}

</mosaic_0001>

<llo_original>
// kernel: kernel_generated_1_forward.1
$region0: #{kernel_generated_1_forward.1}
  #allocation0 [shape = 'u32[]', space=smem, size = 0x4, offset = 0x4, fixed_abs, tag = 'smem constant byte address 0x4 - core index']
  #allocation1 [shape = 'u32[144,128]{1,0:T(1,128)}', space=vmem, size = 0x12000, scoped, tag = 'internal scratch']
  %s0 = inlined_call_operand.vmem [shape: bf16[896,256], index: 0, kind: input, shape index: {}]
  %s1 = inlined_call_operand.vmem [shape: bf16[256,128], index: 1, kind: input, shape index: {}]
  %s2 = inlined_call_operand.vmem [shape: f32[2,128], index: 2, kind: input, shape index: {}]
  %s3 = inlined_call_operand.vmem [shape: f32[896,128], index: 3, kind: output, shape index: {}]
  %s4 = sld [smem:[#allocation0]]
  $region22: #{kernel_generated_1_forward.1} parent=0
    _
  %s6 = ssub.s32 1, %s4
  %s7 = scalar_select 0, %s6, %s4
  // Predicated region
  $region2: #{kernel_generated_1_forward.1} parent=0 // pred_check
    _
  $region3: #{kernel_generated_1_forward.1} parent=0 // pred_check_branch
    %9 = sbr.rel (0) target = $region5
  $region4: #{kernel_generated_1_forward.1} parent=0 // pred_region
    _
  $region5: #{kernel_generated_1_forward.1} parent=0 // pred_fallthru
    _
  // Predicated region
  $region6: #{kernel_generated_1_forward.1} parent=0 // pred_check
    _
  $region7: #{kernel_generated_1_forward.1} parent=0 // pred_check_branch
    %11 = sbr.rel (0) target = $region9
  $region8: #{kernel_generated_1_forward.1} parent=0 // pred_region
    _
  $region9: #{kernel_generated_1_forward.1} parent=0 // pred_fallthru
    _
  // Predicated region
  $region10: #{kernel_generated_1_forward.1} parent=0 // pred_check
    _
  $region11: #{kernel_generated_1_forward.1} parent=0 // pred_check_branch
    %13 = sbr.rel (0) target = $region13
  $region12: #{kernel_generated_1_forward.1} parent=0 // pred_region
    _
  $region13: #{kernel_generated_1_forward.1} parent=0 // pred_fallthru
    _
  %v15 = vld [vmem:[%s0] sm:$0xff]
  %v16 = vld [vmem:[%s0 + $0x8] sm:$0xff]
  %v17 = vld [vmem:[%s0 + $0x10] sm:$0xff]
  %v18 = vld [vmem:[%s0 + $0x18] sm:$0xff]
  %v19 = vld [vmem:[%s0 + $0x20] sm:$0xff]
  %v20 = vld [vmem:[%s0 + $0x28] sm:$0xff]
  %v21 = vld [vmem:[%s0 + $0x30] sm:$0xff]
  %v22 = vld [vmem:[%s0 + $0x38] sm:$0xff]
  %v23 = vld [vmem:[%s0 + $0x40] sm:$0xff]
  %v24 = vld [vmem:[%s0 + $0x48] sm:$0xff]
  %v25 = vld [vmem:[%s0 + $0x50] sm:$0xff]
  %v26 = vld [vmem:[%s0 + $0x58] sm:$0xff]
  %v27 = vld [vmem:[%s0 + $0x60] sm:$0xff]
  %v28 = vld [vmem:[%s0 + $0x68] sm:$0xff]
  %v29 = vld [vmem:[%s0 + $0x70] sm:$0xff]
  %v30 = vld [vmem:[%s0 + $0x78] sm:$0xff]
  %v31 = vld [vmem:[%s0 + $0x80] sm:$0xff]
  %v32 = vld [vmem:[%s0 + $0x88] sm:$0xff]
  %v33 = vld [vmem:[%s0 + $0x90] sm:$0xff]
  %v34 = vld [vmem:[%s0 + $0x98] sm:$0xff]
  %v35 = vld [vmem:[%s0 + $0xa0] sm:$0xff]
  %v36 = vld [vmem:[%s0 + $0xa8] sm:$0xff]
  %v37 = vld [vmem:[%s0 + $0xb0] sm:$0xff]
  %v38 = vld [vmem:[%s0 + $0xb8] sm:$0xff]
  %v39 = vld [vmem:[%s0 + $0xc0] sm:$0xff]
  %v40 = vld [vmem:[%s0 + $0xc8] sm:$0xff]
  %v41 = vld [vmem:[%s0 + $0xd0] sm:$0xff]
  %v42 = vld [vmem:[%s0 + $0xd8] sm:$0xff]
  %v43 = vld [vmem:[%s0 + $0xe0] sm:$0xff]
  %v44 = vld [vmem:[%s0 + $0xe8] sm:$0xff]
  %v45 = vld [vmem:[%s0 + $0xf0] sm:$0xff]
  %v46 = vld [vmem:[%s0 + $0xf8] sm:$0xff]
  %v47 = vld [vmem:[%s0 + $0x100] sm:$0xff]
  %v48 = vld [vmem:[%s0 + $0x108] sm:$0xff]
  %v49 = vld [vmem:[%s0 + $0x110] sm:$0xff]
  %v50 = vld [vmem:[%s0 + $0x118] sm:$0xff]
  %v51 = vld [vmem:[%s0 + $0x120] sm:$0xff]
  %v52 = vld [vmem:[%s0 + $0x128] sm:$0xff]
  %v53 = vld [vmem:[%s0 + $0x130] sm:$0xff]
  %v54 = vld [vmem:[%s0 + $0x138] sm:$0xff]
  %v55 = vld [vmem:[%s0 + $0x140] sm:$0xff]
  %v56 = vld [vmem:[%s0 + $0x148] sm:$0xff]
  %v57 = vld [vmem:[%s0 + $0x150] sm:$0xff]
  %v58 = vld [vmem:[%s0 + $0x158] sm:$0xff]
  %v59 = vld [vmem:[%s0 + $0x160] sm:$0xff]
  %v60 = vld [vmem:[%s0 + $0x168] sm:$0xff]
  %v61 = vld [vmem:[%s0 + $0x170] sm:$0xff]
  %v62 = vld [vmem:[%s0 + $0x178] sm:$0xff]
  %v63 = vld [vmem:[%s0 + $0x180] sm:$0xff]
  %v64 = vld [vmem:[%s0 + $0x188] sm:$0xff]
  %v65 = vld [vmem:[%s0 + $0x190] sm:$0xff]
  %v66 = vld [vmem:[%s0 + $0x198] sm:$0xff]
  %v67 = vld [vmem:[%s0 + $0x1a0] sm:$0xff]
  %v68 = vld [vmem:[%s0 + $0x1a8] sm:$0xff]
  %v69 = vld [vmem:[%s0 + $0x1b0] sm:$0xff]
  %v70 = vld [vmem:[%s0 + $0x1b8] sm:$0xff]
  %v71 = vld [vmem:[%s0 + $0x1c0] sm:$0xff]
  %v72 = vld [vmem:[%s0 + $0x1c8] sm:$0xff]
  %v73 = vld [vmem:[%s0 + $0x1d0] sm:$0xff]
  %v74 = vld [vmem:[%s0 + $0x1d8] sm:$0xff]
  %v75 = vld [vmem:[%s0 + $0x1e0] sm:$0xff]
  %v76 = vld [vmem:[%s0 + $0x1e8] sm:$0xff]
  %v77 = vld [vmem:[%s0 + $0x1f0] sm:$0xff]
  %v78 = vld [vmem:[%s0 + $0x1f8] sm:$0xff]
  %v79 = vld [vmem:[%s0 + $0x200] sm:$0xff]
  %v80 = vld [vmem:[%s0 + $0x208] sm:$0xff]
  %v81 = vld [vmem:[%s0 + $0x210] sm:$0xff]
  %v82 = vld [vmem:[%s0 + $0x218] sm:$0xff]
  %v83 = vld [vmem:[%s0 + $0x220] sm:$0xff]
  %v84 = vld [vmem:[%s0 + $0x228] sm:$0xff]
  %v85 = vld [vmem:[%s0 + $0x230] sm:$0xff]
  %v86 = vld [vmem:[%s0 + $0x238] sm:$0xff]
  %v87 = vld [vmem:[%s0 + $0x240] sm:$0xff]
  %v88 = vld [vmem:[%s0 + $0x248] sm:$0xff]
  %v89 = vld [vmem:[%s0 + $0x250] sm:$0xff]
  %v90 = vld [vmem:[%s0 + $0x258] sm:$0xff]
  %v91 = vld [vmem:[%s0 + $0x260] sm:$0xff]
  %v92 = vld [vmem:[%s0 + $0x268] sm:$0xff]
  %v93 = vld [vmem:[%s0 + $0x270] sm:$0xff]
  %v94 = vld [vmem:[%s0 + $0x278] sm:$0xff]
  %v95 = vld [vmem:[%s0 + $0x280] sm:$0xff]
  %v96 = vld [vmem:[%s0 + $0x288] sm:$0xff]
  %v97 = vld [vmem:[%s0 + $0x290] sm:$0xff]
  %v98 = vld [vmem:[%s0 + $0x298] sm:$0xff]
  %v99 = vld [vmem:[%s0 + $0x2a0] sm:$0xff]
  %v100 = vld [vmem:[%s0 + $0x2a8] sm:$0xff]
  %v101 = vld [vmem:[%s0 + $0x2b0] sm:$0xff]
  %v102 = vld [vmem:[%s0 + $0x2b8] sm:$0xff]
  %v103 = vld [vmem:[%s0 + $0x2c0] sm:$0xff]
  %v104 = vld [vmem:[%s0 + $0x2c8] sm:$0xff]
  %v105 = vld [vmem:[%s0 + $0x2d0] sm:$0xff]
  %v106 = vld [vmem:[%s0 + $0x2d8] sm:$0xff]
  %v107 = vld [vmem:[%s0 + $0x2e0] sm:$0xff]
  %v108 = vld [vmem:[%s0 + $0x2e8] sm:$0xff]
  %v109 = vld [vmem:[%s0 + $0x2f0] sm:$0xff]
  %v110 = vld [vmem:[%s0 + $0x2f8] sm:$0xff]
  %v111 = vld [vmem:[%s0 + $0x300] sm:$0xff]
  %v112 = vld [vmem:[%s0 + $0x308] sm:$0xff]
  %v113 = vld [vmem:[%s0 + $0x310] sm:$0xff]
  %v114 = vld [vmem:[%s0 + $0x318] sm:$0xff]
  %v115 = vld [vmem:[%s0 + $0x320] sm:$0xff]
  %v116 = vld [vmem:[%s0 + $0x328] sm:$0xff]
  %v117 = vld [vmem:[%s0 + $0x330] sm:$0xff]
  %v118 = vld [vmem:[%s0 + $0x338] sm:$0xff]
  %v119 = vld [vmem:[%s0 + $0x340] sm:$0xff]
  %v120 = vld [vmem:[%s0 + $0x348] sm:$0xff]
  %v121 = vld [vmem:[%s0 + $0x350] sm:$0xff]
  %v122 = vld [vmem:[%s0 + $0x358] sm:$0xff]
  %v123 = vld [vmem:[%s0 + $0x360] sm:$0xff]
  %v124 = vld [vmem:[%s0 + $0x368] sm:$0xff]
  %v125 = vld [vmem:[%s0 + $0x370] sm:$0xff]
  %v126 = vld [vmem:[%s0 + $0x378] sm:$0xff]
  %v127 = vld [vmem:[%s1] sm:$0xf]
  %v128 = vld [vmem:[%s1 + $0x4] sm:$0xf]
  %v129 = vld [vmem:[%s1 + $0x8] sm:$0xf]
  %v130 = vld [vmem:[%s1 + $0xc] sm:$0xf]
  %v131 = vld [vmem:[%s1 + $0x10] sm:$0xf]
  %v132 = vld [vmem:[%s1 + $0x14] sm:$0xf]
  %v133 = vld [vmem:[%s1 + $0x18] sm:$0xf]
  %v134 = vld [vmem:[%s1 + $0x1c] sm:$0xf]
  %v135 = vld [vmem:[%s1 + $0x20] sm:$0xf]
  %v136 = vld [vmem:[%s1 + $0x24] sm:$0xf]
  %v137 = vld [vmem:[%s1 + $0x28] sm:$0xf]
  %v138 = vld [vmem:[%s1 + $0x2c] sm:$0xf]
  %v139 = vld [vmem:[%s1 + $0x30] sm:$0xf]
  %v140 = vld [vmem:[%s1 + $0x34] sm:$0xf]
  %v141 = vld [vmem:[%s1 + $0x38] sm:$0xf]
  %v142 = vld [vmem:[%s1 + $0x3c] sm:$0xf]
  %v143 = vld [vmem:[%s1 + $0x40] sm:$0xf]
  %v144 = vld [vmem:[%s1 + $0x44] sm:$0xf]
  %v145 = vld [vmem:[%s1 + $0x48] sm:$0xf]
  %v146 = vld [vmem:[%s1 + $0x4c] sm:$0xf]
  %v147 = vld [vmem:[%s1 + $0x50] sm:$0xf]
  %v148 = vld [vmem:[%s1 + $0x54] sm:$0xf]
  %v149 = vld [vmem:[%s1 + $0x58] sm:$0xf]
  %v150 = vld [vmem:[%s1 + $0x5c] sm:$0xf]
  %v151 = vld [vmem:[%s1 + $0x60] sm:$0xf]
  %v152 = vld [vmem:[%s1 + $0x64] sm:$0xf]
  %v153 = vld [vmem:[%s1 + $0x68] sm:$0xf]
  %v154 = vld [vmem:[%s1 + $0x6c] sm:$0xf]
  %v155 = vld [vmem:[%s1 + $0x70] sm:$0xf]
  %v156 = vld [vmem:[%s1 + $0x74] sm:$0xf]
  %v157 = vld [vmem:[%s1 + $0x78] sm:$0xf]
  %v158 = vld [vmem:[%s1 + $0x7c] sm:$0xf]
  %v271 = vunpack.c.l.b16 %v15
  %v272 = vunpack.c.h.b16 %v15
  %v273 = vunpack.c.l.b16 %v16
  %v274 = vunpack.c.h.b16 %v16
  %v275 = vunpack.c.l.b16 %v17
  %v276 = vunpack.c.h.b16 %v17
  %v277 = vunpack.c.l.b16 %v18
  %v278 = vunpack.c.h.b16 %v18
  %v279 = vunpack.c.l.b16 %v19
  %v280 = vunpack.c.h.b16 %v19
  %v281 = vunpack.c.l.b16 %v20
  %v282 = vunpack.c.h.b16 %v20
  %v283 = vunpack.c.l.b16 %v21
  %v284 = vunpack.c.h.b16 %v21
  %v285 = vunpack.c.l.b16 %v22
  %v286 = vunpack.c.h.b16 %v22
  %v287 = vunpack.c.l.b16 %v23
  %v288 = vunpack.c.h.b16 %v23
  %v289 = vunpack.c.l.b16 %v24
  %v290 = vunpack.c.h.b16 %v24
  %v291 = vunpack.c.l.b16 %v25
  %v292 = vunpack.c.h.b16 %v25
  %v293 = vunpack.c.l.b16 %v26
  %v294 = vunpack.c.h.b16 %v26
  %v295 = vunpack.c.l.b16 %v27
  %v296 = vunpack.c.h.b16 %v27
  %v297 = vunpack.c.l.b16 %v28
  %v298 = vunpack.c.h.b16 %v28
  %v299 = vunpack.c.l.b16 %v29
  %v300 = vunpack.c.h.b16 %v29
  %v301 = vunpack.c.l.b16 %v30
  %v302 = vunpack.c.h.b16 %v30
  %v303 = vunpack.c.l.b16 %v31
  %v304 = vunpack.c.h.b16 %v31
  %v305 = vunpack.c.l.b16 %v32
  %v306 = vunpack.c.h.b16 %v32
  %v307 = vunpack.c.l.b16 %v33
  %v308 = vunpack.c.h.b16 %v33
  %v309 = vunpack.c.l.b16 %v34
  %v310 = vunpack.c.h.b16 %v34
  %v311 = vunpack.c.l.b16 %v35
  %v312 = vunpack.c.h.b16 %v35
  %v313 = vunpack.c.l.b16 %v36
  %v314 = vunpack.c.h.b16 %v36
  %v315 = vunpack.c.l.b16 %v37
  %v316 = vunpack.c.h.b16 %v37
  %v317 = vunpack.c.l.b16 %v38
  %v318 = vunpack.c.h.b16 %v38
  %v319 = vunpack.c.l.b16 %v39
  %v320 = vunpack.c.h.b16 %v39
  %v321 = vunpack.c.l.b16 %v40
  %v322 = vunpack.c.h.b16 %v40
  %v323 = vunpack.c.l.b16 %v41
  %v324 = vunpack.c.h.b16 %v41
  %v325 = vunpack.c.l.b16 %v42
  %v326 = vunpack.c.h.b16 %v42
  %v327 = vunpack.c.l.b16 %v43
  %v328 = vunpack.c.h.b16 %v43
  %v329 = vunpack.c.l.b16 %v44
  %v330 = vunpack.c.h.b16 %v44
  %v331 = vunpack.c.l.b16 %v45
  %v332 = vunpack.c.h.b16 %v45
  %v333 = vunpack.c.l.b16 %v46
  %v334 = vunpack.c.h.b16 %v46
  %v335 = vunpack.c.l.b16 %v47
  %v336 = vunpack.c.h.b16 %v47
  %v337 = vunpack.c.l.b16 %v48
  %v338 = vunpack.c.h.b16 %v48
  %v339 = vunpack.c.l.b16 %v49
  %v340 = vunpack.c.h.b16 %v49
  %v341 = vunpack.c.l.b16 %v50
  %v342 = vunpack.c.h.b16 %v50
  %v343 = vunpack.c.l.b16 %v51
  %v344 = vunpack.c.h.b16 %v51
  %v345 = vunpack.c.l.b16 %v52
  %v346 = vunpack.c.h.b16 %v52
  %v347 = vunpack.c.l.b16 %v53
  %v348 = vunpack.c.h.b16 %v53
  %v349 = vunpack.c.l.b16 %v54
  %v350 = vunpack.c.h.b16 %v54
  %v351 = vunpack.c.l.b16 %v55
  %v352 = vunpack.c.h.b16 %v55
  %v353 = vunpack.c.l.b16 %v56
  %v354 = vunpack.c.h.b16 %v56
  %v355 = vunpack.c.l.b16 %v57
  %v356 = vunpack.c.h.b16 %v57
  %v357 = vunpack.c.l.b16 %v58
  %v358 = vunpack.c.h.b16 %v58
  %v359 = vunpack.c.l.b16 %v59
  %v360 = vunpack.c.h.b16 %v59
  %v361 = vunpack.c.l.b16 %v60
  %v362 = vunpack.c.h.b16 %v60
  %v363 = vunpack.c.l.b16 %v61
  %v364 = vunpack.c.h.b16 %v61
  %v365 = vunpack.c.l.b16 %v62
  %v366 = vunpack.c.h.b16 %v62
  %v367 = vunpack.c.l.b16 %v63
  %v368 = vunpack.c.h.b16 %v63
  %v369 = vunpack.c.l.b16 %v64
  %v370 = vunpack.c.h.b16 %v64
  %v371 = vunpack.c.l.b16 %v65
  %v372 = vunpack.c.h.b16 %v65
  %v373 = vunpack.c.l.b16 %v66
  %v374 = vunpack.c.h.b16 %v66
  %v375 = vunpack.c.l.b16 %v67
  %v376 = vunpack.c.h.b16 %v67
  %v377 = vunpack.c.l.b16 %v68
  %v378 = vunpack.c.h.b16 %v68
  %v379 = vunpack.c.l.b16 %v69
  %v380 = vunpack.c.h.b16 %v69
  %v381 = vunpack.c.l.b16 %v70
  %v382 = vunpack.c.h.b16 %v70
  %v383 = vunpack.c.l.b16 %v71
  %v384 = vunpack.c.h.b16 %v71
  %v385 = vunpack.c.l.b16 %v72
  %v386 = vunpack.c.h.b16 %v72
  %v387 = vunpack.c.l.b16 %v73
  %v388 = vunpack.c.h.b16 %v73
  %v389 = vunpack.c.l.b16 %v74
  %v390 = vunpack.c.h.b16 %v74
  %v391 = vunpack.c.l.b16 %v75
  %v392 = vunpack.c.h.b16 %v75
  %v393 = vunpack.c.l.b16 %v76
  %v394 = vunpack.c.h.b16 %v76
  %v395 = vunpack.c.l.b16 %v77
  %v396 = vunpack.c.h.b16 %v77
  %v397 = vunpack.c.l.b16 %v78
  %v398 = vunpack.c.h.b16 %v78
  %v399 = vunpack.c.l.b16 %v79
  %v400 = vunpack.c.h.b16 %v79
  %v401 = vunpack.c.l.b16 %v80
  %v402 = vunpack.c.h.b16 %v80
  %v403 = vunpack.c.l.b16 %v81
  %v404 = vunpack.c.h.b16 %v81
  %v405 = vunpack.c.l.b16 %v82
  %v406 = vunpack.c.h.b16 %v82
  %v407 = vunpack.c.l.b16 %v83
  %v408 = vunpack.c.h.b16 %v83
  %v409 = vunpack.c.l.b16 %v84
  %v410 = vunpack.c.h.b16 %v84
  %v411 = vunpack.c.l.b16 %v85
  %v412 = vunpack.c.h.b16 %v85
  %v413 = vunpack.c.l.b16 %v86
  %v414 = vunpack.c.h.b16 %v86
  %v415 = vunpack.c.l.b16 %v87
  %v416 = vunpack.c.h.b16 %v87
  %v417 = vunpack.c.l.b16 %v88
  %v418 = vunpack.c.h.b16 %v88
  %v419 = vunpack.c.l.b16 %v89
  %v420 = vunpack.c.h.b16 %v89
  %v421 = vunpack.c.l.b16 %v90
  %v422 = vunpack.c.h.b16 %v90
  %v423 = vunpack.c.l.b16 %v91
  %v424 = vunpack.c.h.b16 %v91
  %v425 = vunpack.c.l.b16 %v92
  %v426 = vunpack.c.h.b16 %v92
  %v427 = vunpack.c.l.b16 %v93
  %v428 = vunpack.c.h.b16 %v93
  %v429 = vunpack.c.l.b16 %v94
  %v430 = vunpack.c.h.b16 %v94
  %v431 = vunpack.c.l.b16 %v95
  %v432 = vunpack.c.h.b16 %v95
  %v433 = vunpack.c.l.b16 %v96
  %v434 = vunpack.c.h.b16 %v96
  %v435 = vunpack.c.l.b16 %v97
  %v436 = vunpack.c.h.b16 %v97
  %v437 = vunpack.c.l.b16 %v98
  %v438 = vunpack.c.h.b16 %v98
  %v439 = vunpack.c.l.b16 %v99
  %v440 = vunpack.c.h.b16 %v99
  %v441 = vunpack.c.l.b16 %v100
  %v442 = vunpack.c.h.b16 %v100
  %v443 = vunpack.c.l.b16 %v101
  %v444 = vunpack.c.h.b16 %v101
  %v445 = vunpack.c.l.b16 %v102
  %v446 = vunpack.c.h.b16 %v102
  %v447 = vunpack.c.l.b16 %v103
  %v448 = vunpack.c.h.b16 %v103
  %v449 = vunpack.c.l.b16 %v104
  %v450 = vunpack.c.h.b16 %v104
  %v451 = vunpack.c.l.b16 %v105
  %v452 = vunpack.c.h.b16 %v105
  %v453 = vunpack.c.l.b16 %v106
  %v454 = vunpack.c.h.b16 %v106
  %v455 = vunpack.c.l.b16 %v107
  %v456 = vunpack.c.h.b16 %v107
  %v457 = vunpack.c.l.b16 %v108
  %v458 = vunpack.c.h.b16 %v108
  %v459 = vunpack.c.l.b16 %v109
  %v460 = vunpack.c.h.b16 %v109
  %v461 = vunpack.c.l.b16 %v110
  %v462 = vunpack.c.h.b16 %v110
  %v463 = vunpack.c.l.b16 %v111
  %v464 = vunpack.c.h.b16 %v111
  %v465 = vunpack.c.l.b16 %v112
  %v466 = vunpack.c.h.b16 %v112
  %v467 = vunpack.c.l.b16 %v113
  %v468 = vunpack.c.h.b16 %v113
  %v469 = vunpack.c.l.b16 %v114
  %v470 = vunpack.c.h.b16 %v114
  %v471 = vunpack.c.l.b16 %v115
  %v472 = vunpack.c.h.b16 %v115
  %v473 = vunpack.c.l.b16 %v116
  %v474 = vunpack.c.h.b16 %v116
  %v475 = vunpack.c.l.b16 %v117
  %v476 = vunpack.c.h.b16 %v117
  %v477 = vunpack.c.l.b16 %v118
  %v478 = vunpack.c.h.b16 %v118
  %v479 = vunpack.c.l.b16 %v119
  %v480 = vunpack.c.h.b16 %v119
  %v481 = vunpack.c.l.b16 %v120
  %v482 = vunpack.c.h.b16 %v120
  %v483 = vunpack.c.l.b16 %v121
  %v484 = vunpack.c.h.b16 %v121
  %v485 = vunpack.c.l.b16 %v122
  %v486 = vunpack.c.h.b16 %v122
  %v487 = vunpack.c.l.b16 %v123
  %v488 = vunpack.c.h.b16 %v123
  %v489 = vunpack.c.l.b16 %v124
  %v490 = vunpack.c.h.b16 %v124
  %v491 = vunpack.c.l.b16 %v125
  %v492 = vunpack.c.h.b16 %v125
  %v493 = vunpack.c.l.b16 %v126
  %v494 = vunpack.c.h.b16 %v126
  %v495 = vpack.c.b16 %v273, %v271
  %v496 = vpack.c.b16 %v274, %v272
  %v497 = vpack.c.b16 %v277, %v275
  %v498 = vpack.c.b16 %v278, %v276
  %v499 = vpack.c.b16 %v281, %v279
  %v500 = vpack.c.b16 %v282, %v280
  %v501 = vpack.c.b16 %v285, %v283
  %v502 = vpack.c.b16 %v286, %v284
  %v503 = vpack.c.b16 %v289, %v287
  %v504 = vpack.c.b16 %v290, %v288
  %v505 = vpack.c.b16 %v293, %v291
  %v506 = vpack.c.b16 %v294, %v292
  %v507 = vpack.c.b16 %v297, %v295
  %v508 = vpack.c.b16 %v298, %v296
  %v509 = vpack.c.b16 %v301, %v299
  %v510 = vpack.c.b16 %v302, %v300
  %v511 = vpack.c.b16 %v305, %v303
  %v512 = vpack.c.b16 %v306, %v304
  %v513 = vpack.c.b16 %v309, %v307
  %v514 = vpack.c.b16 %v310, %v308
  %v515 = vpack.c.b16 %v313, %v311
  %v516 = vpack.c.b16 %v314, %v312
  %v517 = vpack.c.b16 %v317, %v315
  %v518 = vpack.c.b16 %v318, %v316
  %v519 = vpack.c.b16 %v321, %v319
  %v520 = vpack.c.b16 %v322, %v320
  %v521 = vpack.c.b16 %v325, %v323
  %v522 = vpack.c.b16 %v326, %v324
  %v523 = vpack.c.b16 %v329, %v327
  %v524 = vpack.c.b16 %v330, %v328
  %v525 = vpack.c.b16 %v333, %v331
  %v526 = vpack.c.b16 %v334, %v332
  %v527 = vpack.c.b16 %v337, %v335
  %v528 = vpack.c.b16 %v338, %v336
  %v529 = vpack.c.b16 %v341, %v339
  %v530 = vpack.c.b16 %v342, %v340
  %v531 = vpack.c.b16 %v345, %v343
  %v532 = vpack.c.b16 %v346, %v344
  %v533 = vpack.c.b16 %v349, %v347
  %v534 = vpack.c.b16 %v350, %v348
  %v535 = vpack.c.b16 %v353, %v351
  %v536 = vpack.c.b16 %v354, %v352
  %v537 = vpack.c.b16 %v357, %v355
  %v538 = vpack.c.b16 %v358, %v356
  %v539 = vpack.c.b16 %v361, %v359
  %v540 = vpack.c.b16 %v362, %v360
  %v541 = vpack.c.b16 %v365, %v363
  %v542 = vpack.c.b16 %v366, %v364
  %v543 = vpack.c.b16 %v369, %v367
  %v544 = vpack.c.b16 %v370, %v368
  %v545 = vpack.c.b16 %v373, %v371
  %v546 = vpack.c.b16 %v374, %v372
  %v547 = vpack.c.b16 %v377, %v375
  %v548 = vpack.c.b16 %v378, %v376
  %v549 = vpack.c.b16 %v381, %v379
  %v550 = vpack.c.b16 %v382, %v380
  %v551 = vpack.c.b16 %v385, %v383
  %v552 = vpack.c.b16 %v386, %v384
  %v553 = vpack.c.b16 %v389, %v387
  %v554 = vpack.c.b16 %v390, %v388
  %v555 = vpack.c.b16 %v393, %v391
  %v556 = vpack.c.b16 %v394, %v392
  %v557 = vpack.c.b16 %v397, %v395
  %v558 = vpack.c.b16 %v398, %v396
  %v559 = vpack.c.b16 %v401, %v399
  %v560 = vpack.c.b16 %v402, %v400
  %v561 = vpack.c.b16 %v405, %v403
  %v562 = vpack.c.b16 %v406, %v404
  %v563 = vpack.c.b16 %v409, %v407
  %v564 = vpack.c.b16 %v410, %v408
  %v565 = vpack.c.b16 %v413, %v411
  %v566 = vpack.c.b16 %v414, %v412
  %v567 = vpack.c.b16 %v417, %v415
  %v568 = vpack.c.b16 %v418, %v416
  %v569 = vpack.c.b16 %v421, %v419
  %v570 = vpack.c.b16 %v422, %v420
  %v571 = vpack.c.b16 %v425, %v423
  %v572 = vpack.c.b16 %v426, %v424
  %v573 = vpack.c.b16 %v429, %v427
  %v574 = vpack.c.b16 %v430, %v428
  %v575 = vpack.c.b16 %v433, %v431
  %v576 = vpack.c.b16 %v434, %v432
  %v577 = vpack.c.b16 %v437, %v435
  %v578 = vpack.c.b16 %v438, %v436
  %v579 = vpack.c.b16 %v441, %v439
  %v580 = vpack.c.b16 %v442, %v440
  %v581 = vpack.c.b16 %v445, %v443
  %v582 = vpack.c.b16 %v446, %v444
  %v583 = vpack.c.b16 %v449, %v447
  %v584 = vpack.c.b16 %v450, %v448
  %v585 = vpack.c.b16 %v453, %v451
  %v586 = vpack.c.b16 %v454, %v452
  %v587 = vpack.c.b16 %v457, %v455
  %v588 = vpack.c.b16 %v458, %v456
  %v589 = vpack.c.b16 %v461, %v459
  %v590 = vpack.c.b16 %v462, %v460
  %v591 = vpack.c.b16 %v465, %v463
  %v592 = vpack.c.b16 %v466, %v464
  %v593 = vpack.c.b16 %v469, %v467
  %v594 = vpack.c.b16 %v470, %v468
  %v595 = vpack.c.b16 %v473, %v471
  %v596 = vpack.c.b16 %v474, %v472
  %v597 = vpack.c.b16 %v477, %v475
  %v598 = vpack.c.b16 %v478, %v476
  %v599 = vpack.c.b16 %v481, %v479
  %v600 = vpack.c.b16 %v482, %v480
  %v601 = vpack.c.b16 %v485, %v483
  %v602 = vpack.c.b16 %v486, %v484
  %v603 = vpack.c.b16 %v489, %v487
  %v604 = vpack.c.b16 %v490, %v488
  %v605 = vpack.c.b16 %v493, %v491
  %v606 = vpack.c.b16 %v494, %v492
  %v751 = vunpack.c.l.b16 %v127
  %v752 = vunpack.c.l.b16 %v128
  %v753 = vunpack.c.l.b16 %v129
  %v754 = vunpack.c.l.b16 %v130
  %v755 = vunpack.c.l.b16 %v131
  %v756 = vunpack.c.l.b16 %v132
  %v757 = vunpack.c.l.b16 %v133
  %v758 = vunpack.c.l.b16 %v134
  %v759 = vunpack.c.l.b16 %v135
  %v760 = vunpack.c.l.b16 %v136
  %v761 = vunpack.c.l.b16 %v137
  %v762 = vunpack.c.l.b16 %v138
  %v763 = vunpack.c.l.b16 %v139
  %v764 = vunpack.c.l.b16 %v140
  %v765 = vunpack.c.l.b16 %v141
  %v766 = vunpack.c.l.b16 %v142
  %v767 = vunpack.c.l.b16 %v143
  %v768 = vunpack.c.l.b16 %v144
  %v769 = vunpack.c.l.b16 %v145
  %v770 = vunpack.c.l.b16 %v146
  %v771 = vunpack.c.l.b16 %v147
  %v772 = vunpack.c.l.b16 %v148
  %v773 = vunpack.c.l.b16 %v149
  %v774 = vunpack.c.l.b16 %v150
  %v775 = vunpack.c.l.b16 %v151
  %v776 = vunpack.c.l.b16 %v152
  %v777 = vunpack.c.l.b16 %v153
  %v778 = vunpack.c.l.b16 %v154
  %v779 = vunpack.c.l.b16 %v155
  %v780 = vunpack.c.l.b16 %v156
  %v781 = vunpack.c.l.b16 %v157
  %v782 = vunpack.c.l.b16 %v158
  %v783 = vpack.c.b16 %v752, %v751
  %v784 = vpack.c.b16 %v754, %v753
  %v785 = vpack.c.b16 %v756, %v755
  %v786 = vpack.c.b16 %v758, %v757
  %v787 = vpack.c.b16 %v760, %v759
  %v788 = vpack.c.b16 %v762, %v761
  %v789 = vpack.c.b16 %v764, %v763
  %v790 = vpack.c.b16 %v766, %v765
  %v791 = vpack.c.b16 %v768, %v767
  %v792 = vpack.c.b16 %v770, %v769
  %v793 = vpack.c.b16 %v772, %v771
  %v794 = vpack.c.b16 %v774, %v773
  %v795 = vpack.c.b16 %v776, %v775
  %v796 = vpack.c.b16 %v778, %v777
  %v797 = vpack.c.b16 %v780, %v779
  %v798 = vpack.c.b16 %v782, %v781
  %815 = vmatprep.subr.bf16.mxu0 0
  %816 = vmatpush1.bf16.msra.mxu0 %v783
  %817 = vmatprep.subr.bf16.mxu0 0
  %818 = vmatpush1.bf16.msra.mxu0 %v784
  %819 = vmatprep.subr.bf16.mxu0 0
  %820 = vmatpush1.bf16.msra.mxu0 %v785
  %821 = vmatprep.subr.bf16.mxu0 0
  %822 = vmatpush1.bf16.msra.mxu0 %v786
  %823 = vmatprep.subr.bf16.mxu0 0
  %824 = vmatpush1.bf16.msra.mxu0 %v787
  %825 = vmatprep.subr.bf16.mxu0 0
  %826 = vmatpush1.bf16.msra.mxu0 %v788
  %827 = vmatprep.subr.bf16.mxu0 0
  %828 = vmatpush1.bf16.msra.mxu0 %v789
  %829 = vmatprep.subr.bf16.mxu0 0
  %830 = vmatpush1.bf16.msra.mxu0 %v790
  %831 = vmatprep.subr.bf16.mxu0 0
  %832 = vmatpush1.bf16.msra.mxu0 %v791
  %833 = vmatprep.subr.bf16.mxu0 0
  %834 = vmatpush1.bf16.msra.mxu0 %v792
  %835 = vmatprep.subr.bf16.mxu0 0
  %836 = vmatpush1.bf16.msra.mxu0 %v793
  %837 = vmatprep.subr.bf16.mxu0 0
  %838 = vmatpush1.bf16.msra.mxu0 %v794
  %839 = vmatprep.subr.bf16.mxu0 0
  %840 = vmatpush1.bf16.msra.mxu0 %v795
  %841 = vmatprep.subr.bf16.mxu0 0
  %842 = vmatpush1.bf16.msra.mxu0 %v796
  %843 = vmatprep.subr.bf16.mxu0 0
  %844 = vmatpush1.bf16.msra.mxu0 %v797
  %845 = vmatprep.subr.bf16.mxu0 0
  %846 = vmatpush1.bf16.msra.mxu0 %v798
  %847 = vmatprep.mubr.bf16.mxu0 %v496
  %848 = vmatmul.mubr.bf16.gmra.mrb[0].mxu0 %v495
  %v849 = vpop.f32.mrb[0].mxu0
  %v850 = vadd.f32 0.0, %v849
  %v851 = vpop.f32.mrb[0].mxu0
  %v852 = vpop.f32.mrb[0].mxu0
  %v853 = vadd.f32 0.0, %v852
  %v854 = vpop.f32.mrb[0].mxu0
  %855 = vmatprep.mubr.bf16.mxu0 %v498
  %856 = vmatmul.mubr.bf16.gmra.mrb[0].mxu0 %v497
  %v857 = vpop.f32.mrb[0].mxu0
  %v858 = vadd.f32 0.0, %v857
  %v859 = vpop.f32.mrb[0].mxu0
  %v860 = vpop.f32.mrb[0].mxu0
  %v861 = vadd.f32 0.0, %v860
  %v862 = vpop.f32.mrb[0].mxu0
  %863 = vmatprep.mubr.bf16.mxu0 %v500
  %864 = vmatmul.mubr.bf16.gmra.mrb[0].mxu0 %v499
  %v865 = vpop.f32.mrb[0].mxu0
  %v866 = vadd.f32 0.0, %v865
  %v867 = vpop.f32.mrb[0].mxu0
  %v868 = vpop.f32.mrb[0].mxu0
  %v869 = vadd.f32 0.0, %v868
  %v870 = vpop.f32.mrb[0].mxu0
  %871 = vmatprep.mubr.bf16.mxu0 %v502
  %872 = vmatmul.mubr.bf16.gmra.mrb[0].mxu0 %v501
  %v873 = vpop.f32.mrb[0].mxu0
  %v874 = vadd.f32 0.0, %v873
  %v875 = vpop.f32.mrb[0].mxu0
  %v876 = vpop.f32.mrb[0].mxu0
  %v877 = vadd.f32 0.0, %v876
  %v878 = vpop.f32.mrb[0].mxu0
  %879 = vmatprep.mubr.bf16.mxu0 %v504
  %880 = vmatmul.mubr.bf16.gmra.mrb[0].mxu0 %v503
  %v881 = vpop.f32.mrb[0].mxu0
  %v882 = vadd.f32 0.0, %v881
  %v883 = vpop.f32.mrb[0].mxu0
  %v884 = vpop.f32.mrb[0].mxu0
  %v885 = vadd.f32 0.0, %v884
  %v886 = vpop.f32.mrb[0].mxu0
  %887 = vmatprep.mubr.bf16.mxu0 %v506
  %888 = vmatmul.mubr.bf16.gmra.mrb[0].mxu0 %v505
  %v889 = vpop.f32.mrb[0].mxu0
  %v890 = vadd.f32 0.0, %v889
  %v891 = vpop.f32.mrb[0].mxu0
  %v892 = vpop.f32.mrb[0].mxu0
  %v893 = vadd.f32 0.0, %v892
  %v894 = vpop.f32.mrb[0].mxu0
  %895 = vmatprep.mubr.bf16.mxu0 %v508
  %896 = vmatmul.mubr.bf16.gmra.mrb[0].mxu0 %v507
  %v897 = vpop.f32.mrb[0].mxu0
  %v898 = vadd.f32 0.0, %v897
  %v899 = vpop.f32.mrb[0].mxu0
  %v900 = vpop.f32.mrb[0].mxu0
  %v901 = vadd.f32 0.0, %v900
  %v902 = vpop.f32.mrb[0].mxu0
  %903 = vmatprep.mubr.bf16.mxu0 %v510
  %904 = vmatmul.mubr.bf16.gmra.mrb[0].mxu0 %v509
  %v905 = vpop.f32.mrb[0].mxu0
  %v906 = vadd.f32 0.0, %v905
  %v907 = vpop.f32.mrb[0].mxu0
  %v908 = vpop.f32.mrb[0].mxu0
  %v909 = vadd.f32 0.0, %v908
  %v910 = vpop.f32.mrb[0].mxu0
  %911 = vmatprep.mubr.bf16.mxu0 %v512
  %912 = vmatmul.mubr.bf16.gmra.mrb[0].mxu0 %v511
  %v913 = vpop.f32.mrb[0].mxu0
  %v914 = vadd.f32 0.0, %v913
  %v915 = vpop.f32.mrb[0].mxu0
  %v916 = vpop.f32.mrb[0].mxu0
  %v917 = vadd.f32 0.0, %v916
  %v918 = vpop.f32.mrb[0].mxu0
  %919 = vmatprep.mubr.bf16.mxu0 %v514
  %920 = vmatmul.mubr.bf16.gmra.mrb[0].mxu0 %v513
  %v921 = vpop.f32.mrb[0].mxu0
  %v922 = vadd.f32 0.0, %v921
  %v923 = vpop.f32.mrb[0].mxu0
  %v924 = vpop.f32.mrb[0].mxu0
  %v925 = vadd.f32 0.0, %v924
  %v926 = vpop.f32.mrb[0].mxu0
  %927 = vmatprep.mubr.bf16.mxu0 %v516
  %928 = vmatmul.mubr.bf16.gmra.mrb[0].mxu0 %v515
  %v929 = vpop.f32.mrb[0].mxu0
  %v930 = vadd.f32 0.0, %v929
  %v931 = vpop.f32.mrb[0].mxu0
  %v932 = vpop.f32.mrb[0].mxu0
  %v933 = vadd.f32 0.0, %v932
  %v934 = vpop.f32.mrb[0].mxu0
  %935 = vmatprep.mubr.bf16.mxu0 %v518
  %936 = vmatmul.mubr.bf16.gmra.mrb[0].mxu0 %v517
  %v937 = vpop.f32.mrb[0].mxu0
  %v938 = vadd.f32 0.0, %v937
  %v939 = vpop.f32.mrb[0].mxu0
  %v940 = vpop.f32.mrb[0].mxu0
  %v941 = vadd.f32 0.0, %v940
  %v942 = vpop.f32.mrb[0].mxu0
  %943 = vmatprep.mubr.bf16.mxu0 %v520
  %944 = vmatmul.mubr.bf16.gmra.mrb[0].mxu0 %v519
  %v945 = vpop.f32.mrb[0].mxu0
  %v946 = vadd.f32 0.0, %v945
  %v947 = vpop.f32.mrb[0].mxu0
  %v948 = vpop.f32.mrb[0].mxu0
  %v949 = vadd.f32 0.0, %v948
  %v950 = vpop.f32.mrb[0].mxu0
  %951 = vmatprep.mubr.bf16.mxu0 %v522
  %952 = vmatmul.mubr.bf16.gmra.mrb[0].mxu0 %v521
  %v953 = vpop.f32.mrb[0].mxu0
  %v954 = vadd.f32 0.0, %v953
  %v955 = vpop.f32.mrb[0].mxu0
  %v956 = vpop.f32.mrb[0].mxu0
  %v957 = vadd.f32 0.0, %v956
  %v958 = vpop.f32.mrb[0].mxu0
  %959 = vmatprep.mubr.bf16.mxu0 %v524
  %960 = vmatmul.mubr.bf16.gmra.mrb[0].mxu0 %v523
  %v961 = vpop.f32.mrb[0].mxu0
  %v962 = vadd.f32 0.0, %v961
  %v963 = vpop.f32.mrb[0].mxu0
  %v964 = vpop.f32.mrb[0].mxu0
  %v965 = vadd.f32 0.0, %v964
  %v966 = vpop.f32.mrb[0].mxu0
  %967 = vmatprep.mubr.bf16.mxu0 %v526
  %968 = vmatmul.mubr.bf16.gmra.mrb[0].mxu0 %v525
  %v969 = vpop.f32.mrb[0].mxu0
  %v970 = vadd.f32 0.0, %v969
  %v971 = vpop.f32.mrb[0].mxu0
  %v972 = vpop.f32.mrb[0].mxu0
  %v973 = vadd.f32 0.0, %v972
  %v974 = vpop.f32.mrb[0].mxu0
  %975 = vmatprep.mubr.bf16.mxu0 %v528
  %976 = vmatmul.mubr.bf16.gmra.mrb[0].mxu0 %v527
  %v977 = vpop.f32.mrb[0].mxu0
  %v978 = vadd.f32 0.0, %v977
  %v979 = vpop.f32.mrb[0].mxu0
  %v980 = vpop.f32.mrb[0].mxu0
  %v981 = vadd.f32 0.0, %v980
  %v982 = vpop.f32.mrb[0].mxu0
  %983 = vmatprep.mubr.bf16.mxu0 %v530
  %984 = vmatmul.mubr.bf16.gmra.mrb[0].mxu0 %v529
  %v985 = vpop.f32.mrb[0].mxu0
  %v986 = vadd.f32 0.0, %v985
  %v987 = vpop.f32.mrb[0].mxu0
  %v988 = vpop.f32.mrb[0].mxu0
  %v989 = vadd.f32 0.0, %v988
  %v990 = vpop.f32.mrb[0].mxu0
  %991 = vmatprep.mubr.bf16.mxu0 %v532
  %992 = vmatmul.mubr.bf16.gmra.mrb[0].mxu0 %v531
  %v993 = vpop.f32.mrb[0].mxu0
  %v994 = vadd.f32 0.0, %v993
  %v995 = vpop.f32.mrb[0].mxu0
  %v996 = vpop.f32.mrb[0].mxu0
  %v997 = vadd.f32 0.0, %v996
  %v998 = vpop.f32.mrb[0].mxu0
  %999 = vmatprep.mubr.bf16.mxu0 %v534
  %1000 = vmatmul.mubr.bf16.gmra.mrb[0].mxu0 %v533
  %v1001 = vpop.f32.mrb[0].mxu0
  %v1002 = vadd.f32 0.0, %v1001
  %v1003 = vpop.f32.mrb[0].mxu0
  %v1004 = vpop.f32.mrb[0].mxu0
  %v1005 = vadd.f32 0.0, %v1004
  %v1006 = vpop.f32.mrb[0].mxu0
  %1007 = vmatprep.mubr.bf16.mxu0 %v536
  %1008 = vmatmul.mubr.bf16.gmra.mrb[0].mxu0 %v535
  %v1009 = vpop.f32.mrb[0].mxu0
  %v1010 = vadd.f32 0.0, %v1009
  %v1011 = vpop.f32.mrb[0].mxu0
  %v1012 = vpop.f32.mrb[0].mxu0
  %v1013 = vadd.f32 0.0, %v1012
  %v1014 = vpop.f32.mrb[0].mxu0
  %1015 = vmatprep.mubr.bf16.mxu0 %v538
  %1016 = vmatmul.mubr.bf16.gmra.mrb[0].mxu0 %v537
  %v1017 = vpop.f32.mrb[0].mxu0
  %v1018 = vadd.f32 0.0, %v1017
  %v1019 = vpop.f32.mrb[0].mxu0
  %v1020 = vpop.f32.mrb[0].mxu0
  %v1021 = vadd.f32 0.0, %v1020
  %v1022 = vpop.f32.mrb[0].mxu0
  %1023 = vmatprep.mubr.bf16.mxu0 %v540
  %1024 = vmatmul.mubr.bf16.gmra.mrb[0].mxu0 %v539
  %v1025 = vpop.f32.mrb[0].mxu0
  %v1026 = vadd.f32 0.0, %v1025
  %v1027 = vpop.f32.mrb[0].mxu0
  %v1028 = vpop.f32.mrb[0].mxu0
  %v1029 = vadd.f32 0.0, %v1028
  %v1030 = vpop.f32.mrb[0].mxu0
  %1031 = vmatprep.mubr.bf16.mxu0 %v542
  %1032 = vmatmul.mubr.bf16.gmra.mrb[0].mxu0 %v541
  %v1033 = vpop.f32.mrb[0].mxu0
  %v1034 = vadd.f32 0.0, %v1033
  %v1035 = vpop.f32.mrb[0].mxu0
  %v1036 = vpop.f32.mrb[0].mxu0
  %v1037 = vadd.f32 0.0, %v1036
  %v1038 = vpop.f32.mrb[0].mxu0
  %1039 = vmatprep.mubr.bf16.mxu0 %v544
  %1040 = vmatmul.mubr.bf16.gmra.mrb[0].mxu0 %v543
  %v1041 = vpop.f32.mrb[0].mxu0
  %v1042 = vadd.f32 0.0, %v1041
  %v1043 = vpop.f32.mrb[0].mxu0
  %v1044 = vpop.f32.mrb[0].mxu0
  %v1045 = vadd.f32 0.0, %v1044
  %v1046 = vpop.f32.mrb[0].mxu0
  %1047 = vmatprep.mubr.bf16.mxu0 %v546
  %1048 = vmatmul.mubr.bf16.gmra.mrb[0].mxu0 %v545
  %v1049 = vpop.f32.mrb[0].mxu0
  %v1050 = vadd.f32 0.0, %v1049
  %v1051 = vpop.f32.mrb[0].mxu0
  %v1052 = vpop.f32.mrb[0].mxu0
  %v1053 = vadd.f32 0.0, %v1052
  %v1054 = vpop.f32.mrb[0].mxu0
  %1055 = vmatprep.mubr.bf16.mxu0 %v548
  %1056 = vmatmul.mubr.bf16.gmra.mrb[0].mxu0 %v547
  %v1057 = vpop.f32.mrb[0].mxu0
  %v1058 = vadd.f32 0.0, %v1057
  %v1059 = vpop.f32.mrb[0].mxu0
  %v1060 = vpop.f32.mrb[0].mxu0
  %v1061 = vadd.f32 0.0, %v1060
  %v1062 = vpop.f32.mrb[0].mxu0
  %1063 = vmatprep.mubr.bf16.mxu0 %v550
  %1064 = vmatmul.mubr.bf16.gmra.mrb[0].mxu0 %v549
  %v1065 = vpop.f32.mrb[0].mxu0
  %v1066 = vadd.f32 0.0, %v1065
  %v1067 = vpop.f32.mrb[0].mxu0
  %v1068 = vpop.f32.mrb[0].mxu0
  %v1069 = vadd.f32 0.0, %v1068
  %v1070 = vpop.f32.mrb[0].mxu0
  %1071 = vmatprep.mubr.bf16.mxu0 %v552
  %1072 = vmatmul.mubr.bf16.gmra.mrb[0].mxu0 %v551
  %v1073 = vpop.f32.mrb[0].mxu0
  %v1074 = vadd.f32 0.0, %v1073
  %v1075 = vpop.f32.mrb[0].mxu0
  %v1076 = vpop.f32.mrb[0].mxu0
  %v1077 = vadd.f32 0.0, %v1076
  %v1078 = vpop.f32.mrb[0].mxu0
  %1079 = vmatprep.mubr.bf16.mxu0 %v554
  %1080 = vmatmul.mubr.bf16.gmra.mrb[0].mxu0 %v553
  %v1081 = vpop.f32.mrb[0].mxu0
  %v1082 = vadd.f32 0.0, %v1081
  %v1083 = vpop.f32.mrb[0].mxu0
  %v1084 = vpop.f32.mrb[0].mxu0
  %v1085 = vadd.f32 0.0, %v1084
  %v1086 = vpop.f32.mrb[0].mxu0
  %1087 = vmatprep.mubr.bf16.mxu0 %v556
  %1088 = vmatmul.mubr.bf16.gmra.mrb[0].mxu0 %v555
  %v1089 = vpop.f32.mrb[0].mxu0
  %v1090 = vadd.f32 0.0, %v1089
  %v1091 = vpop.f32.mrb[0].mxu0
  %v1092 = vpop.f32.mrb[0].mxu0
  %v1093 = vadd.f32 0.0, %v1092
  %v1094 = vpop.f32.mrb[0].mxu0
  %1095 = vmatprep.mubr.bf16.mxu0 %v558
  %1096 = vmatmul.mubr.bf16.gmra.mrb[0].mxu0 %v557
  %v1097 = vpop.f32.mrb[0].mxu0
  %v1098 = vadd.f32 0.0, %v1097
  %v1099 = vpop.f32.mrb[0].mxu0
  %v1100 = vpop.f32.mrb[0].mxu0
  %v1101 = vadd.f32 0.0, %v1100
  %v1102 = vpop.f32.mrb[0].mxu0
  %1103 = vmatprep.mubr.bf16.mxu0 %v560
  %1104 = vmatmul.mubr.bf16.gmra.mrb[0].mxu0 %v559
  %v1105 = vpop.f32.mrb[0].mxu0
  %v1106 = vadd.f32 0.0, %v1105
  %v1107 = vpop.f32.mrb[0].mxu0
  %v1108 = vpop.f32.mrb[0].mxu0
  %v1109 = vadd.f32 0.0, %v1108
  %v1110 = vpop.f32.mrb[0].mxu0
  %1111 = vmatprep.mubr.bf16.mxu0 %v562
  %1112 = vmatmul.mubr.bf16.gmra.mrb[0].mxu0 %v561
  %v1113 = vpop.f32.mrb[0].mxu0
  %v1114 = vadd.f32 0.0, %v1113
  %v1115 = vpop.f32.mrb[0].mxu0
  %v1116 = vpop.f32.mrb[0].mxu0
  %v1117 = vadd.f32 0.0, %v1116
  %v1118 = vpop.f32.mrb[0].mxu0
  %1119 = vmatprep.mubr.bf16.mxu0 %v564
  %1120 = vmatmul.mubr.bf16.gmra.mrb[0].mxu0 %v563
  %v1121 = vpop.f32.mrb[0].mxu0
  %v1122 = vadd.f32 0.0, %v1121
  %v1123 = vpop.f32.mrb[0].mxu0
  %v1124 = vpop.f32.mrb[0].mxu0
  %v1125 = vadd.f32 0.0, %v1124
  %v1126 = vpop.f32.mrb[0].mxu0
  %1127 = vmatprep.mubr.bf16.mxu0 %v566
  %1128 = vmatmul.mubr.bf16.gmra.mrb[0].mxu0 %v565
  %v1129 = vpop.f32.mrb[0].mxu0
  %v1130 = vadd.f32 0.0, %v1129
  %v1131 = vpop.f32.mrb[0].mxu0
  %v1132 = vpop.f32.mrb[0].mxu0
  %v1133 = vadd.f32 0.0, %v1132
  %v1134 = vpop.f32.mrb[0].mxu0
  %1135 = vmatprep.mubr.bf16.mxu0 %v568
  %1136 = vmatmul.mubr.bf16.gmra.mrb[0].mxu0 %v567
  %v1137 = vpop.f32.mrb[0].mxu0
  %v1138 = vadd.f32 0.0, %v1137
  %v1139 = vpop.f32.mrb[0].mxu0
  %v1140 = vpop.f32.mrb[0].mxu0
  %v1141 = vadd.f32 0.0, %v1140
  %v1142 = vpop.f32.mrb[0].mxu0
  %1143 = vmatprep.mubr.bf16.mxu0 %v570
  %1144 = vmatmul.mubr.bf16.gmra.mrb[0].mxu0 %v569
  %v1145 = vpop.f32.mrb[0].mxu0
  %v1146 = vadd.f32 0.0, %v1145
  %v1147 = vpop.f32.mrb[0].mxu0
  %v1148 = vpop.f32.mrb[0].mxu0
  %v1149 = vadd.f32 0.0, %v1148
  %v1150 = vpop.f32.mrb[0].mxu0
  %1151 = vmatprep.mubr.bf16.mxu0 %v572
  %1152 = vmatmul.mubr.bf16.gmra.mrb[0].mxu0 %v571
  %v1153 = vpop.f32.mrb[0].mxu0
  %v1154 = vadd.f32 0.0, %v1153
  %v1155 = vpop.f32.mrb[0].mxu0
  %v1156 = vpop.f32.mrb[0].mxu0
  %v1157 = vadd.f32 0.0, %v1156
  %v1158 = vpop.f32.mrb[0].mxu0
  %1159 = vmatprep.mubr.bf16.mxu0 %v574
  %1160 = vmatmul.mubr.bf16.gmra.mrb[0].mxu0 %v573
  %v1161 = vpop.f32.mrb[0].mxu0
  %v1162 = vadd.f32 0.0, %v1161
  %v1163 = vpop.f32.mrb[0].mxu0
  %v1164 = vpop.f32.mrb[0].mxu0
  %v1165 = vadd.f32 0.0, %v1164
  %v1166 = vpop.f32.mrb[0].mxu0
  %1167 = vmatprep.mubr.bf16.mxu0 %v576
  %1168 = vmatmul.mubr.bf16.gmra.mrb[0].mxu0 %v575
  %v1169 = vpop.f32.mrb[0].mxu0
  %v1170 = vadd.f32 0.0, %v1169
  %v1171 = vpop.f32.mrb[0].mxu0
  %v1172 = vpop.f32.mrb[0].mxu0
  %v1173 = vadd.f32 0.0, %v1172
  %v1174 = vpop.f32.mrb[0].mxu0
  %1175 = vmatprep.mubr.bf16.mxu0 %v578
  %1176 = vmatmul.mubr.bf16.gmra.mrb[0].mxu0 %v577
  %v1177 = vpop.f32.mrb[0].mxu0
  %v1178 = vadd.f32 0.0, %v1177
  %v1179 = vpop.f32.mrb[0].mxu0
  %v1180 = vpop.f32.mrb[0].mxu0
  %v1181 = vadd.f32 0.0, %v1180
  %v1182 = vpop.f32.mrb[0].mxu0
  %1183 = vmatprep.mubr.bf16.mxu0 %v580
  %1184 = vmatmul.mubr.bf16.gmra.mrb[0].mxu0 %v579
  %v1185 = vpop.f32.mrb[0].mxu0
  %v1186 = vadd.f32 0.0, %v1185
  %v1187 = vpop.f32.mrb[0].mxu0
  %v1188 = vpop.f32.mrb[0].mxu0
  %v1189 = vadd.f32 0.0, %v1188
  %v1190 = vpop.f32.mrb[0].mxu0
  %1191 = vmatprep.mubr.bf16.mxu0 %v582
  %1192 = vmatmul.mubr.bf16.gmra.mrb[0].mxu0 %v581
  %v1193 = vpop.f32.mrb[0].mxu0
  %v1194 = vadd.f32 0.0, %v1193
  %v1195 = vpop.f32.mrb[0].mxu0
  %v1196 = vpop.f32.mrb[0].mxu0
  %v1197 = vadd.f32 0.0, %v1196
  %v1198 = vpop.f32.mrb[0].mxu0
  %1199 = vmatprep.mubr.bf16.mxu0 %v584
  %1200 = vmatmul.mubr.bf16.gmra.mrb[0].mxu0 %v583
  %v1201 = vpop.f32.mrb[0].mxu0
  %v1202 = vadd.f32 0.0, %v1201
  %v1203 = vpop.f32.mrb[0].mxu0
  %v1204 = vpop.f32.mrb[0].mxu0
  %v1205 = vadd.f32 0.0, %v1204
  %v1206 = vpop.f32.mrb[0].mxu0
  %1207 = vmatprep.mubr.bf16.mxu0 %v586
  %1208 = vmatmul.mubr.bf16.gmra.mrb[0].mxu0 %v585
  %v1209 = vpop.f32.mrb[0].mxu0
  %v1210 = vadd.f32 0.0, %v1209
  %v1211 = vpop.f32.mrb[0].mxu0
  %v1212 = vpop.f32.mrb[0].mxu0
  %v1213 = vadd.f32 0.0, %v1212
  %v1214 = vpop.f32.mrb[0].mxu0
  %1215 = vmatprep.mubr.bf16.mxu0 %v588
  %1216 = vmatmul.mubr.bf16.gmra.mrb[0].mxu0 %v587
  %v1217 = vpop.f32.mrb[0].mxu0
  %v1218 = vadd.f32 0.0, %v1217
  %v1219 = vpop.f32.mrb[0].mxu0
  %v1220 = vpop.f32.mrb[0].mxu0
  %v1221 = vadd.f32 0.0, %v1220
  %v1222 = vpop.f32.mrb[0].mxu0
  %1223 = vmatprep.mubr.bf16.mxu0 %v590
  %1224 = vmatmul.mubr.bf16.gmra.mrb[0].mxu0 %v589
  %v1225 = vpop.f32.mrb[0].mxu0
  %v1226 = vadd.f32 0.0, %v1225
  %v1227 = vpop.f32.mrb[0].mxu0
  %v1228 = vpop.f32.mrb[0].mxu0
  %v1229 = vadd.f32 0.0, %v1228
  %v1230 = vpop.f32.mrb[0].mxu0
  %1231 = vmatprep.mubr.bf16.mxu0 %v592
  %1232 = vmatmul.mubr.bf16.gmra.mrb[0].mxu0 %v591
  %v1233 = vpop.f32.mrb[0].mxu0
  %v1234 = vadd.f32 0.0, %v1233
  %v1235 = vpop.f32.mrb[0].mxu0
  %v1236 = vpop.f32.mrb[0].mxu0
  %v1237 = vadd.f32 0.0, %v1236
  %v1238 = vpop.f32.mrb[0].mxu0
  %1239 = vmatprep.mubr.bf16.mxu0 %v594
  %1240 = vmatmul.mubr.bf16.gmra.mrb[0].mxu0 %v593
  %v1241 = vpop.f32.mrb[0].mxu0
  %v1242 = vadd.f32 0.0, %v1241
  %v1243 = vpop.f32.mrb[0].mxu0
  %v1244 = vpop.f32.mrb[0].mxu0
  %v1245 = vadd.f32 0.0, %v1244
  %v1246 = vpop.f32.mrb[0].mxu0
  %1247 = vmatprep.mubr.bf16.mxu0 %v596
  %1248 = vmatmul.mubr.bf16.gmra.mrb[0].mxu0 %v595
  %v1249 = vpop.f32.mrb[0].mxu0
  %v1250 = vadd.f32 0.0, %v1249
  %v1251 = vpop.f32.mrb[0].mxu0
  %v1252 = vpop.f32.mrb[0].mxu0
  %v1253 = vadd.f32 0.0, %v1252
  %v1254 = vpop.f32.mrb[0].mxu0
  %1255 = vmatprep.mubr.bf16.mxu0 %v598
  %1256 = vmatmul.mubr.bf16.gmra.mrb[0].mxu0 %v597
  %v1257 = vpop.f32.mrb[0].mxu0
  %v1258 = vadd.f32 0.0, %v1257
  %v1259 = vpop.f32.mrb[0].mxu0
  %v1260 = vpop.f32.mrb[0].mxu0
  %v1261 = vadd.f32 0.0, %v1260
  %v1262 = vpop.f32.mrb[0].mxu0
  %1263 = vmatprep.mubr.bf16.mxu0 %v600
  %1264 = vmatmul.mubr.bf16.gmra.mrb[0].mxu0 %v599
  %v1265 = vpop.f32.mrb[0].mxu0
  %v1266 = vadd.f32 0.0, %v1265
  %v1267 = vpop.f32.mrb[0].mxu0
  %v1268 = vpop.f32.mrb[0].mxu0
  %v1269 = vadd.f32 0.0, %v1268
  %v1270 = vpop.f32.mrb[0].mxu0
  %1271 = vmatprep.mubr.bf16.mxu0 %v602
  %1272 = vmatmul.mubr.bf16.gmra.mrb[0].mxu0 %v601
  %v1273 = vpop.f32.mrb[0].mxu0
  %v1274 = vadd.f32 0.0, %v1273
  %v1275 = vpop.f32.mrb[0].mxu0
  %v1276 = vpop.f32.mrb[0].mxu0
  %v1277 = vadd.f32 0.0, %v1276
  %v1278 = vpop.f32.mrb[0].mxu0
  %1279 = vmatprep.mubr.bf16.mxu0 %v604
  %1280 = vmatmul.mubr.bf16.gmra.mrb[0].mxu0 %v603
  %v1281 = vpop.f32.mrb[0].mxu0
  %v1282 = vadd.f32 0.0, %v1281
  %v1283 = vpop.f32.mrb[0].mxu0
  %v1284 = vpop.f32.mrb[0].mxu0
  %v1285 = vadd.f32 0.0, %v1284
  %v1286 = vpop.f32.mrb[0].mxu0
  %1287 = vmatprep.mubr.bf16.mxu0 %v606
  %1288 = vmatmul.mubr.bf16.gmra.mrb[0].mxu0 %v605
  %v1289 = vpop.f32.mrb[0].mxu0
  %v1290 = vadd.f32 0.0, %v1289
  %v1291 = vpop.f32.mrb[0].mxu0
  %v1292 = vpop.f32.mrb[0].mxu0
  %v1293 = vadd.f32 0.0, %v1292
  %v1294 = vpop.f32.mrb[0].mxu0
  %1295 = vdwg.mxu0
  %v1296 = vld [vmem:[%s2] sm:$0x3]
  %v1297 = vlaneseq
  %v1298 = vshrl.u32 %v1297, 7
  %v1299 = vsub.s32 0, %v1298
  %v1300 = vrot.slane %v1296, %v1299
  %v1301 = vmul.f32 %v850, %v1300
  %v1302 = vmul.f32 %v853, %v1300
  %v1303 = vmul.f32 %v858, %v1300
  %v1304 = vmul.f32 %v861, %v1300
  %v1305 = vmul.f32 %v866, %v1300
  %v1306 = vmul.f32 %v869, %v1300
  %v1307 = vmul.f32 %v874, %v1300
  %v1308 = vmul.f32 %v877, %v1300
  %v1309 = vmul.f32 %v882, %v1300
  %v1310 = vmul.f32 %v885, %v1300
  %v1311 = vmul.f32 %v890, %v1300
  %v1312 = vmul.f32 %v893, %v1300
  %v1313 = vmul.f32 %v898, %v1300
  %v1314 = vmul.f32 %v901, %v1300
  %v1315 = vmul.f32 %v906, %v1300
  %v1316 = vmul.f32 %v909, %v1300
  %v1317 = vmul.f32 %v914, %v1300
  %v1318 = vmul.f32 %v917, %v1300
  %v1319 = vmul.f32 %v922, %v1300
  %v1320 = vmul.f32 %v925, %v1300
  %v1321 = vmul.f32 %v930, %v1300
  %v1322 = vmul.f32 %v933, %v1300
  %v1323 = vmul.f32 %v938, %v1300
  %v1324 = vmul.f32 %v941, %v1300
  %v1325 = vmul.f32 %v946, %v1300
  %v1326 = vmul.f32 %v949, %v1300
  %v1327 = vmul.f32 %v954, %v1300
  %v1328 = vmul.f32 %v957, %v1300
  %v1329 = vmul.f32 %v962, %v1300
  %v1330 = vmul.f32 %v965, %v1300
  %v1331 = vmul.f32 %v970, %v1300
  %v1332 = vmul.f32 %v973, %v1300
  %v1333 = vmul.f32 %v978, %v1300
  %v1334 = vmul.f32 %v981, %v1300
  %v1335 = vmul.f32 %v986, %v1300
  %v1336 = vmul.f32 %v989, %v1300
  %v1337 = vmul.f32 %v994, %v1300
  %v1338 = vmul.f32 %v997, %v1300
  %v1339 = vmul.f32 %v1002, %v1300
  %v1340 = vmul.f32 %v1005, %v1300
  %v1341 = vmul.f32 %v1010, %v1300
  %v1342 = vmul.f32 %v1013, %v1300
  %v1343 = vmul.f32 %v1018, %v1300
  %v1344 = vmul.f32 %v1021, %v1300
  %v1345 = vmul.f32 %v1026, %v1300
  %v1346 = vmul.f32 %v1029, %v1300
  %v1347 = vmul.f32 %v1034, %v1300
  %v1348 = vmul.f32 %v1037, %v1300
  %v1349 = vmul.f32 %v1042, %v1300
  %v1350 = vmul.f32 %v1045, %v1300
  %v1351 = vmul.f32 %v1050, %v1300
  %v1352 = vmul.f32 %v1053, %v1300
  %v1353 = vmul.f32 %v1058, %v1300
  %v1354 = vmul.f32 %v1061, %v1300
  %v1355 = vmul.f32 %v1066, %v1300
  %v1356 = vmul.f32 %v1069, %v1300
  %v1357 = vmul.f32 %v1074, %v1300
  %v1358 = vmul.f32 %v1077, %v1300
  %v1359 = vmul.f32 %v1082, %v1300
  %v1360 = vmul.f32 %v1085, %v1300
  %v1361 = vmul.f32 %v1090, %v1300
  %v1362 = vmul.f32 %v1093, %v1300
  %v1363 = vmul.f32 %v1098, %v1300
  %v1364 = vmul.f32 %v1101, %v1300
  %v1365 = vmul.f32 %v1106, %v1300
  %v1366 = vmul.f32 %v1109, %v1300
  %v1367 = vmul.f32 %v1114, %v1300
  %v1368 = vmul.f32 %v1117, %v1300
  %v1369 = vmul.f32 %v1122, %v1300
  %v1370 = vmul.f32 %v1125, %v1300
  %v1371 = vmul.f32 %v1130, %v1300
  %v1372 = vmul.f32 %v1133, %v1300
  %v1373 = vmul.f32 %v1138, %v1300
  %v1374 = vmul.f32 %v1141, %v1300
  %v1375 = vmul.f32 %v1146, %v1300
  %v1376 = vmul.f32 %v1149, %v1300
  %v1377 = vmul.f32 %v1154, %v1300
  %v1378 = vmul.f32 %v1157, %v1300
  %v1379 = vmul.f32 %v1162, %v1300
  %v1380 = vmul.f32 %v1165, %v1300
  %v1381 = vmul.f32 %v1170, %v1300
  %v1382 = vmul.f32 %v1173, %v1300
  %v1383 = vmul.f32 %v1178, %v1300
  %v1384 = vmul.f32 %v1181, %v1300
  %v1385 = vmul.f32 %v1186, %v1300
  %v1386 = vmul.f32 %v1189, %v1300
  %v1387 = vmul.f32 %v1194, %v1300
  %v1388 = vmul.f32 %v1197, %v1300
  %v1389 = vmul.f32 %v1202, %v1300
  %v1390 = vmul.f32 %v1205, %v1300
  %v1391 = vmul.f32 %v1210, %v1300
  %v1392 = vmul.f32 %v1213, %v1300
  %v1393 = vmul.f32 %v1218, %v1300
  %v1394 = vmul.f32 %v1221, %v1300
  %v1395 = vmul.f32 %v1226, %v1300
  %v1396 = vmul.f32 %v1229, %v1300
  %v1397 = vmul.f32 %v1234, %v1300
  %v1398 = vmul.f32 %v1237, %v1300
  %v1399 = vmul.f32 %v1242, %v1300
  %v1400 = vmul.f32 %v1245, %v1300
  %v1401 = vmul.f32 %v1250, %v1300
  %v1402 = vmul.f32 %v1253, %v1300
  %v1403 = vmul.f32 %v1258, %v1300
  %v1404 = vmul.f32 %v1261, %v1300
  %v1405 = vmul.f32 %v1266, %v1300
  %v1406 = vmul.f32 %v1269, %v1300
  %v1407 = vmul.f32 %v1274, %v1300
  %v1408 = vmul.f32 %v1277, %v1300
  %v1409 = vmul.f32 %v1282, %v1300
  %v1410 = vmul.f32 %v1285, %v1300
  %v1411 = vmul.f32 %v1290, %v1300
  %v1412 = vmul.f32 %v1293, %v1300
  %v1413 = vlaneseq
  %v1414 = vshrl.u32 %v1413, 7
  %v1415 = vsub.s32 1, %v1414
  %v1416 = vrot.slane %v1296, %v1415
  %v1417 = vmul.f32 %v1282, %v1416
  %v1418 = vmul.f32 %v1285, %v1416
  %v1419 = vmul.f32 %v1290, %v1416
  %v1420 = vmul.f32 %v1293, %v1416
  %v1421 = vmul.f32 %v850, %v1416
  %v1422 = vmul.f32 %v853, %v1416
  %v1423 = vmul.f32 %v858, %v1416
  %v1424 = vmul.f32 %v861, %v1416
  %v1425 = vmul.f32 %v866, %v1416
  %v1426 = vmul.f32 %v869, %v1416
  %v1427 = vmul.f32 %v874, %v1416
  %v1428 = vmul.f32 %v877, %v1416
  %v1429 = vmul.f32 %v882, %v1416
  %v1430 = vmul.f32 %v885, %v1416
  %v1431 = vmul.f32 %v890, %v1416
  %v1432 = vmul.f32 %v893, %v1416
  %v1433 = vmul.f32 %v898, %v1416
  %v1434 = vmul.f32 %v901, %v1416
  %v1435 = vmul.f32 %v906, %v1416
  %v1436 = vmul.f32 %v909, %v1416
  %v1437 = vmul.f32 %v914, %v1416
  %v1438 = vmul.f32 %v917, %v1416
  %v1439 = vmul.f32 %v922, %v1416
  %v1440 = vmul.f32 %v925, %v1416
  %v1441 = vmul.f32 %v930, %v1416
  %v1442 = vmul.f32 %v933, %v1416
  %v1443 = vmul.f32 %v938, %v1416
  %v1444 = vmul.f32 %v941, %v1416
  %v1445 = vmul.f32 %v946, %v1416
  %v1446 = vmul.f32 %v949, %v1416
  %v1447 = vmul.f32 %v954, %v1416
  %v1448 = vmul.f32 %v957, %v1416
  %v1449 = vmul.f32 %v962, %v1416
  %v1450 = vmul.f32 %v965, %v1416
  %v1451 = vmul.f32 %v970, %v1416
  %v1452 = vmul.f32 %v973, %v1416
  %v1453 = vmul.f32 %v978, %v1416
  %v1454 = vmul.f32 %v981, %v1416
  %v1455 = vmul.f32 %v986, %v1416
  %v1456 = vmul.f32 %v989, %v1416
  %v1457 = vmul.f32 %v994, %v1416
  %v1458 = vmul.f32 %v997, %v1416
  %v1459 = vmul.f32 %v1002, %v1416
  %v1460 = vmul.f32 %v1005, %v1416
  %v1461 = vmul.f32 %v1010, %v1416
  %v1462 = vmul.f32 %v1013, %v1416
  %v1463 = vmul.f32 %v1018, %v1416
  %v1464 = vmul.f32 %v1021, %v1416
  %v1465 = vmul.f32 %v1026, %v1416
  %v1466 = vmul.f32 %v1029, %v1416
  %v1467 = vmul.f32 %v1034, %v1416
  %v1468 = vmul.f32 %v1037, %v1416
  %v1469 = vmul.f32 %v1042, %v1416
  %v1470 = vmul.f32 %v1045, %v1416
  %v1471 = vmul.f32 %v1050, %v1416
  %v1472 = vmul.f32 %v1053, %v1416
  %v1473 = vmul.f32 %v1058, %v1416
  %v1474 = vmul.f32 %v1061, %v1416
  %v1475 = vmul.f32 %v1066, %v1416
  %v1476 = vmul.f32 %v1069, %v1416
  %v1477 = vmul.f32 %v1074, %v1416
  %v1478 = vmul.f32 %v1077, %v1416
  %v1479 = vmul.f32 %v1082, %v1416
  %v1480 = vmul.f32 %v1085, %v1416
  %v1481 = vmul.f32 %v1090, %v1416
  %v1482 = vmul.f32 %v1093, %v1416
  %v1483 = vmul.f32 %v1098, %v1416
  %v1484 = vmul.f32 %v1101, %v1416
  %v1485 = vmul.f32 %v1106, %v1416
  %v1486 = vmul.f32 %v1109, %v1416
  %v1487 = vmul.f32 %v1114, %v1416
  %v1488 = vmul.f32 %v1117, %v1416
  %v1489 = vmul.f32 %v1122, %v1416
  %v1490 = vmul.f32 %v1125, %v1416
  %v1491 = vmul.f32 %v1130, %v1416
  %v1492 = vmul.f32 %v1133, %v1416
  %v1493 = vmul.f32 %v1138, %v1416
  %v1494 = vmul.f32 %v1141, %v1416
  %v1495 = vmul.f32 %v1146, %v1416
  %v1496 = vmul.f32 %v1149, %v1416
  %v1497 = vmul.f32 %v1154, %v1416
  %v1498 = vmul.f32 %v1157, %v1416
  %v1499 = vmul.f32 %v1162, %v1416
  %v1500 = vmul.f32 %v1165, %v1416
  %v1501 = vmul.f32 %v1170, %v1416
  %v1502 = vmul.f32 %v1173, %v1416
  %v1503 = vmul.f32 %v1178, %v1416
  %v1504 = vmul.f32 %v1181, %v1416
  %v1505 = vmul.f32 %v1186, %v1416
  %v1506 = vmul.f32 %v1189, %v1416
  %v1507 = vmul.f32 %v1194, %v1416
  %v1508 = vmul.f32 %v1197, %v1416
  %v1509 = vmul.f32 %v1202, %v1416
  %v1510 = vmul.f32 %v1205, %v1416
  %v1511 = vmul.f32 %v1210, %v1416
  %v1512 = vmul.f32 %v1213, %v1416
  %v1513 = vmul.f32 %v1218, %v1416
  %v1514 = vmul.f32 %v1221, %v1416
  %v1515 = vmul.f32 %v1226, %v1416
  %v1516 = vmul.f32 %v1229, %v1416
  %v1517 = vmul.f32 %v1234, %v1416
  %v1518 = vmul.f32 %v1237, %v1416
  %v1519 = vmul.f32 %v1242, %v1416
  %v1520 = vmul.f32 %v1245, %v1416
  %v1521 = vmul.f32 %v1250, %v1416
  %v1522 = vmul.f32 %v1253, %v1416
  %v1523 = vmul.f32 %v1258, %v1416
  %v1524 = vmul.f32 %v1261, %v1416
  %v1525 = vmul.f32 %v1266, %v1416
  %v1526 = vmul.f32 %v1269, %v1416
  %v1527 = vmul.f32 %v1274, %v1416
  %v1528 = vmul.f32 %v1277, %v1416
  %v1529 = vadd.f32 %v1301, %v1417
  %v1530 = vadd.f32 %v1302, %v1418
  %v1531 = vadd.f32 %v1303, %v1419
  %v1532 = vadd.f32 %v1304, %v1420
  %v1533 = vadd.f32 %v1305, %v1421
  %v1534 = vadd.f32 %v1306, %v1422
  %v1535 = vadd.f32 %v1307, %v1423
  %v1536 = vadd.f32 %v1308, %v1424
  %v1537 = vadd.f32 %v1309, %v1425
  %v1538 = vadd.f32 %v1310, %v1426
  %v1539 = vadd.f32 %v1311, %v1427
  %v1540 = vadd.f32 %v1312, %v1428
  %v1541 = vadd.f32 %v1313, %v1429
  %v1542 = vadd.f32 %v1314, %v1430
  %v1543 = vadd.f32 %v1315, %v1431
  %v1544 = vadd.f32 %v1316, %v1432
  %v1545 = vadd.f32 %v1317, %v1433
  %v1546 = vadd.f32 %v1318, %v1434
  %v1547 = vadd.f32 %v1319, %v1435
  %v1548 = vadd.f32 %v1320, %v1436
  %v1549 = vadd.f32 %v1321, %v1437
  %v1550 = vadd.f32 %v1322, %v1438
  %v1551 = vadd.f32 %v1323, %v1439
  %v1552 = vadd.f32 %v1324, %v1440
  %v1553 = vadd.f32 %v1325, %v1441
  %v1554 = vadd.f32 %v1326, %v1442
  %v1555 = vadd.f32 %v1327, %v1443
  %v1556 = vadd.f32 %v1328, %v1444
  %v1557 = vadd.f32 %v1329, %v1445
  %v1558 = vadd.f32 %v1330, %v1446
  %v1559 = vadd.f32 %v1331, %v1447
  %v1560 = vadd.f32 %v1332, %v1448
  %v1561 = vadd.f32 %v1333, %v1449
  %v1562 = vadd.f32 %v1334, %v1450
  %v1563 = vadd.f32 %v1335, %v1451
  %v1564 = vadd.f32 %v1336, %v1452
  %v1565 = vadd.f32 %v1337, %v1453
  %v1566 = vadd.f32 %v1338, %v1454
  %v1567 = vadd.f32 %v1339, %v1455
  %v1568 = vadd.f32 %v1340, %v1456
  %v1569 = vadd.f32 %v1341, %v1457
  %v1570 = vadd.f32 %v1342, %v1458
  %v1571 = vadd.f32 %v1343, %v1459
  %v1572 = vadd.f32 %v1344, %v1460
  %v1573 = vadd.f32 %v1345, %v1461
  %v1574 = vadd.f32 %v1346, %v1462
  %v1575 = vadd.f32 %v1347, %v1463
  %v1576 = vadd.f32 %v1348, %v1464
  %v1577 = vadd.f32 %v1349, %v1465
  %v1578 = vadd.f32 %v1350, %v1466
  %v1579 = vadd.f32 %v1351, %v1467
  %v1580 = vadd.f32 %v1352, %v1468
  %v1581 = vadd.f32 %v1353, %v1469
  %v1582 = vadd.f32 %v1354, %v1470
  %v1583 = vadd.f32 %v1355, %v1471
  %v1584 = vadd.f32 %v1356, %v1472
  %v1585 = vadd.f32 %v1357, %v1473
  %v1586 = vadd.f32 %v1358, %v1474
  %v1587 = vadd.f32 %v1359, %v1475
  %v1588 = vadd.f32 %v1360, %v1476
  %v1589 = vadd.f32 %v1361, %v1477
  %v1590 = vadd.f32 %v1362, %v1478
  %v1591 = vadd.f32 %v1363, %v1479
  %v1592 = vadd.f32 %v1364, %v1480
  %v1593 = vadd.f32 %v1365, %v1481
  %v1594 = vadd.f32 %v1366, %v1482
  %v1595 = vadd.f32 %v1367, %v1483
  %v1596 = vadd.f32 %v1368, %v1484
  %v1597 = vadd.f32 %v1369, %v1485
  %v1598 = vadd.f32 %v1370, %v1486
  %v1599 = vadd.f32 %v1371, %v1487
  %v1600 = vadd.f32 %v1372, %v1488
  %v1601 = vadd.f32 %v1373, %v1489
  %v1602 = vadd.f32 %v1374, %v1490
  %v1603 = vadd.f32 %v1375, %v1491
  %v1604 = vadd.f32 %v1376, %v1492
  %v1605 = vadd.f32 %v1377, %v1493
  %v1606 = vadd.f32 %v1378, %v1494
  %v1607 = vadd.f32 %v1379, %v1495
  %v1608 = vadd.f32 %v1380, %v1496
  %v1609 = vadd.f32 %v1381, %v1497
  %v1610 = vadd.f32 %v1382, %v1498
  %v1611 = vadd.f32 %v1383, %v1499
  %v1612 = vadd.f32 %v1384, %v1500
  %v1613 = vadd.f32 %v1385, %v1501
  %v1614 = vadd.f32 %v1386, %v1502
  %v1615 = vadd.f32 %v1387, %v1503
  %v1616 = vadd.f32 %v1388, %v1504
  %v1617 = vadd.f32 %v1389, %v1505
  %v1618 = vadd.f32 %v1390, %v1506
  %v1619 = vadd.f32 %v1391, %v1507
  %v1620 = vadd.f32 %v1392, %v1508
  %v1621 = vadd.f32 %v1393, %v1509
  %v1622 = vadd.f32 %v1394, %v1510
  %v1623 = vadd.f32 %v1395, %v1511
  %v1624 = vadd.f32 %v1396, %v1512
  %v1625 = vadd.f32 %v1397, %v1513
  %v1626 = vadd.f32 %v1398, %v1514
  %v1627 = vadd.f32 %v1399, %v1515
  %v1628 = vadd.f32 %v1400, %v1516
  %v1629 = vadd.f32 %v1401, %v1517
  %v1630 = vadd.f32 %v1402, %v1518
  %v1631 = vadd.f32 %v1403, %v1519
  %v1632 = vadd.f32 %v1404, %v1520
  %v1633 = vadd.f32 %v1405, %v1521
  %v1634 = vadd.f32 %v1406, %v1522
  %v1635 = vadd.f32 %v1407, %v1523
  %v1636 = vadd.f32 %v1408, %v1524
  %v1637 = vadd.f32 %v1409, %v1525
  %v1638 = vadd.f32 %v1410, %v1526
  %v1639 = vadd.f32 %v1411, %v1527
  %v1640 = vadd.f32 %v1412, %v1528
  %1641 = vst [vmem:[%s3] sm:$0xff] %v1529
  %1642 = vst [vmem:[%s3 + $0x8] sm:$0xff] %v1530
  %1643 = vst [vmem:[%s3 + $0x10] sm:$0xff] %v1531
  %1644 = vst [vmem:[%s3 + $0x18] sm:$0xff] %v1532
  %1645 = vst [vmem:[%s3 + $0x20] sm:$0xff] %v1533
  %1646 = vst [vmem:[%s3 + $0x28] sm:$0xff] %v1534
  %1647 = vst [vmem:[%s3 + $0x30] sm:$0xff] %v1535
  %1648 = vst [vmem:[%s3 + $0x38] sm:$0xff] %v1536
  %1649 = vst [vmem:[%s3 + $0x40] sm:$0xff] %v1537
  %1650 = vst [vmem:[%s3 + $0x48] sm:$0xff] %v1538
  %1651 = vst [vmem:[%s3 + $0x50] sm:$0xff] %v1539
  %1652 = vst [vmem:[%s3 + $0x58] sm:$0xff] %v1540
  %1653 = vst [vmem:[%s3 + $0x60] sm:$0xff] %v1541
  %1654 = vst [vmem:[%s3 + $0x68] sm:$0xff] %v1542
  %1655 = vst [vmem:[%s3 + $0x70] sm:$0xff] %v1543
  %1656 = vst [vmem:[%s3 + $0x78] sm:$0xff] %v1544
  %1657 = vst [vmem:[%s3 + $0x80] sm:$0xff] %v1545
  %1658 = vst [vmem:[%s3 + $0x88] sm:$0xff] %v1546
  %1659 = vst [vmem:[%s3 + $0x90] sm:$0xff] %v1547
  %1660 = vst [vmem:[%s3 + $0x98] sm:$0xff] %v1548
  %1661 = vst [vmem:[%s3 + $0xa0] sm:$0xff] %v1549
  %1662 = vst [vmem:[%s3 + $0xa8] sm:$0xff] %v1550
  %1663 = vst [vmem:[%s3 + $0xb0] sm:$0xff] %v1551
  %1664 = vst [vmem:[%s3 + $0xb8] sm:$0xff] %v1552
  %1665 = vst [vmem:[%s3 + $0xc0] sm:$0xff] %v1553
  %1666 = vst [vmem:[%s3 + $0xc8] sm:$0xff] %v1554
  %1667 = vst [vmem:[%s3 + $0xd0] sm:$0xff] %v1555
  %1668 = vst [vmem:[%s3 + $0xd8] sm:$0xff] %v1556
  %1669 = vst [vmem:[%s3 + $0xe0] sm:$0xff] %v1557
  %1670 = vst [vmem:[%s3 + $0xe8] sm:$0xff] %v1558
  %1671 = vst [vmem:[%s3 + $0xf0] sm:$0xff] %v1559
  %1672 = vst [vmem:[%s3 + $0xf8] sm:$0xff] %v1560
  %1673 = vst [vmem:[%s3 + $0x100] sm:$0xff] %v1561
  %1674 = vst [vmem:[%s3 + $0x108] sm:$0xff] %v1562
  %1675 = vst [vmem:[%s3 + $0x110] sm:$0xff] %v1563
  %1676 = vst [vmem:[%s3 + $0x118] sm:$0xff] %v1564
  %1677 = vst [vmem:[%s3 + $0x120] sm:$0xff] %v1565
  %1678 = vst [vmem:[%s3 + $0x128] sm:$0xff] %v1566
  %1679 = vst [vmem:[%s3 + $0x130] sm:$0xff] %v1567
  %1680 = vst [vmem:[%s3 + $0x138] sm:$0xff] %v1568
  %1681 = vst [vmem:[%s3 + $0x140] sm:$0xff] %v1569
  %1682 = vst [vmem:[%s3 + $0x148] sm:$0xff] %v1570
  %1683 = vst [vmem:[%s3 + $0x150] sm:$0xff] %v1571
  %1684 = vst [vmem:[%s3 + $0x158] sm:$0xff] %v1572
  %1685 = vst [vmem:[%s3 + $0x160] sm:$0xff] %v1573
  %1686 = vst [vmem:[%s3 + $0x168] sm:$0xff] %v1574
  %1687 = vst [vmem:[%s3 + $0x170] sm:$0xff] %v1575
  %1688 = vst [vmem:[%s3 + $0x178] sm:$0xff] %v1576
  %1689 = vst [vmem:[%s3 + $0x180] sm:$0xff] %v1577
  %1690 = vst [vmem:[%s3 + $0x188] sm:$0xff] %v1578
  %1691 = vst [vmem:[%s3 + $0x190] sm:$0xff] %v1579
  %1692 = vst [vmem:[%s3 + $0x198] sm:$0xff] %v1580
  %1693 = vst [vmem:[%s3 + $0x1a0] sm:$0xff] %v1581
  %1694 = vst [vmem:[%s3 + $0x1a8] sm:$0xff] %v1582
  %1695 = vst [vmem:[%s3 + $0x1b0] sm:$0xff] %v1583
  %1696 = vst [vmem:[%s3 + $0x1b8] sm:$0xff] %v1584
  %1697 = vst [vmem:[%s3 + $0x1c0] sm:$0xff] %v1585
  %1698 = vst [vmem:[%s3 + $0x1c8] sm:$0xff] %v1586
  %1699 = vst [vmem:[%s3 + $0x1d0] sm:$0xff] %v1587
  %1700 = vst [vmem:[%s3 + $0x1d8] sm:$0xff] %v1588
  %1701 = vst [vmem:[%s3 + $0x1e0] sm:$0xff] %v1589
  %1702 = vst [vmem:[%s3 + $0x1e8] sm:$0xff] %v1590
  %1703 = vst [vmem:[%s3 + $0x1f0] sm:$0xff] %v1591
  %1704 = vst [vmem:[%s3 + $0x1f8] sm:$0xff] %v1592
  %1705 = vst [vmem:[%s3 + $0x200] sm:$0xff] %v1593
  %1706 = vst [vmem:[%s3 + $0x208] sm:$0xff] %v1594
  %1707 = vst [vmem:[%s3 + $0x210] sm:$0xff] %v1595
  %1708 = vst [vmem:[%s3 + $0x218] sm:$0xff] %v1596
  %1709 = vst [vmem:[%s3 + $0x220] sm:$0xff] %v1597
  %1710 = vst [vmem:[%s3 + $0x228] sm:$0xff] %v1598
  %1711 = vst [vmem:[%s3 + $0x230] sm:$0xff] %v1599
  %1712 = vst [vmem:[%s3 + $0x238] sm:$0xff] %v1600
  %1713 = vst [vmem:[%s3 + $0x240] sm:$0xff] %v1601
  %1714 = vst [vmem:[%s3 + $0x248] sm:$0xff] %v1602
  %1715 = vst [vmem:[%s3 + $0x250] sm:$0xff] %v1603
  %1716 = vst [vmem:[%s3 + $0x258] sm:$0xff] %v1604
  %1717 = vst [vmem:[%s3 + $0x260] sm:$0xff] %v1605
  %1718 = vst [vmem:[%s3 + $0x268] sm:$0xff] %v1606
  %1719 = vst [vmem:[%s3 + $0x270] sm:$0xff] %v1607
  %1720 = vst [vmem:[%s3 + $0x278] sm:$0xff] %v1608
  %1721 = vst [vmem:[%s3 + $0x280] sm:$0xff] %v1609
  %1722 = vst [vmem:[%s3 + $0x288] sm:$0xff] %v1610
  %1723 = vst [vmem:[%s3 + $0x290] sm:$0xff] %v1611
  %1724 = vst [vmem:[%s3 + $0x298] sm:$0xff] %v1612
  %1725 = vst [vmem:[%s3 + $0x2a0] sm:$0xff] %v1613
  %1726 = vst [vmem:[%s3 + $0x2a8] sm:$0xff] %v1614
  %1727 = vst [vmem:[%s3 + $0x2b0] sm:$0xff] %v1615
  %1728 = vst [vmem:[%s3 + $0x2b8] sm:$0xff] %v1616
  %1729 = vst [vmem:[%s3 + $0x2c0] sm:$0xff] %v1617
  %1730 = vst [vmem:[%s3 + $0x2c8] sm:$0xff] %v1618
  %1731 = vst [vmem:[%s3 + $0x2d0] sm:$0xff] %v1619
  %1732 = vst [vmem:[%s3 + $0x2d8] sm:$0xff] %v1620
  %1733 = vst [vmem:[%s3 + $0x2e0] sm:$0xff] %v1621
  %1734 = vst [vmem:[%s3 + $0x2e8] sm:$0xff] %v1622
  %1735 = vst [vmem:[%s3 + $0x2f0] sm:$0xff] %v1623
  %1736 = vst [vmem:[%s3 + $0x2f8] sm:$0xff] %v1624
  %1737 = vst [vmem:[%s3 + $0x300] sm:$0xff] %v1625
  %1738 = vst [vmem:[%s3 + $0x308] sm:$0xff] %v1626
  %1739 = vst [vmem:[%s3 + $0x310] sm:$0xff] %v1627
  %1740 = vst [vmem:[%s3 + $0x318] sm:$0xff] %v1628
  %1741 = vst [vmem:[%s3 + $0x320] sm:$0xff] %v1629
  %1742 = vst [vmem:[%s3 + $0x328] sm:$0xff] %v1630
  %1743 = vst [vmem:[%s3 + $0x330] sm:$0xff] %v1631
  %1744 = vst [vmem:[%s3 + $0x338] sm:$0xff] %v1632
  %1745 = vst [vmem:[%s3 + $0x340] sm:$0xff] %v1633
  %1746 = vst [vmem:[%s3 + $0x348] sm:$0xff] %v1634
  %1747 = vst [vmem:[%s3 + $0x350] sm:$0xff] %v1635
  %1748 = vst [vmem:[%s3 + $0x358] sm:$0xff] %v1636
  %1749 = vst [vmem:[%s3 + $0x360] sm:$0xff] %v1637
  %1750 = vst [vmem:[%s3 + $0x368] sm:$0xff] %v1638
  %1751 = vst [vmem:[%s3 + $0x370] sm:$0xff] %v1639
  %1752 = vst [vmem:[%s3 + $0x378] sm:$0xff] %v1640
  // Predicated region
  $region14: #{kernel_generated_1_forward.1} parent=0 // pred_check
    _
  $region15: #{kernel_generated_1_forward.1} parent=0 // pred_check_branch
    %1754 = sbr.rel (0) target = $region17
  $region16: #{kernel_generated_1_forward.1} parent=0 // pred_region
    _
  $region17: #{kernel_generated_1_forward.1} parent=0 // pred_fallthru
    _
  // Predicated region
  $region18: #{kernel_generated_1_forward.1} parent=0 // pred_check
    _
  $region19: #{kernel_generated_1_forward.1} parent=0 // pred_check_branch
    %1756 = sbr.rel (0) target = $region21
  $region20: #{kernel_generated_1_forward.1} parent=0 // pred_region
    _
  $region21: #{kernel_generated_1_forward.1} parent=0 // pred_fallthru
    _

</llo_original>
